<compile_context>
chip_gen: v6e
topology: v6e:2x2x1
jax: 0.10.0
libtpu: 0.0.40
codegen_flags: <defaults>
</compile_context>

<pallas_src>
import jax
import jax.numpy as jnp
from jax.experimental import pallas as pl
from jax.experimental.pallas import tpu as pltpu


def _round_up(x, m):
    return (x + m - 1) // m * m


def _cdiv(a, b):
    return (a + b - 1) // b


def _subject_decoder_kernel(score_ref, feats_ref, wt_ref, b_ref, out_ref):
    # score_ref: (TB, N)    small; upcast to f32 in-kernel
    # feats_ref: (TB, N, D) dominant operand, kept in its HBM dtype (bf16/f32)
    # wt_ref:    (D, Jp)    pre-transposed Linear weight (grid-invariant)
    # b_ref:     (1, Jp)    f32 bias (grid-invariant)
    # out_ref:   (TB, Jp)   f32
    n = feats_ref.shape[1]
    score = score_ref[...].astype(jnp.float32)                       # (TB, N)
    # bmm((TB,1,N),(TB,N,D)) as an unrolled accumulation: one (TB, D) f32
    # accumulator, f32 VPU multiplies (portable to v5e), no big intermediate.
    acc = score[:, 0:1] * feats_ref[:, 0, :].astype(jnp.float32)     # (TB, D)
    for i in range(1, n):
        acc = acc + score[:, i:i + 1] * feats_ref[:, i, :].astype(jnp.float32)
    # Linear: fused @ W^T + b on the MXU (weight dtype, f32 accumulation).
    fused = acc.astype(wt_ref.dtype)
    out = jnp.dot(fused, wt_ref[...], preferred_element_type=jnp.float32)
    out_ref[...] = (out + b_ref[...]).astype(out_ref.dtype)


def subject_decoder(sub_feats, total_ann_score, weight, bias, *,
                    vmem_budget_bytes=None):
    """sub_feats: (B, N, D), total_ann_score: (B, N),
       weight: (jemb, D) (PyTorch Linear layout), bias: (jemb,) -> (B, jemb) f32."""
    B, N, D = sub_feats.shape
    jemb, d_w = weight.shape
    assert d_w == D and bias.shape == (jemb,)
    assert total_ann_score.shape == (B, N)

    # ---- parameter-side layout plumbing (tiny, one-time) -------------------
    # Pre-transpose the Linear weight to (D, Jp) so the MXU sees (K, N); pad
    # the output dim to a lane-dense multiple of 128 only when misaligned.
    Jp = _round_up(jemb, 128)
    w_dtype = weight.dtype
    if Jp == jemb:
        wt = weight.T
        b2 = bias.astype(jnp.float32).reshape(1, jemb)
    else:
        wt = jnp.zeros((D, Jp), w_dtype).at[:, :jemb].set(weight.T)
        b2 = jnp.zeros((1, Jp), jnp.float32).at[0, :jemb].set(
            bias.astype(jnp.float32))
    # The big operands (feats, score) are passed through untouched: no padded
    # f32 copies, no HBM casts. Batch raggedness is handled by the grid's
    # masked boundary block instead of padding.

    # ---- VMEM-accounted batch tile ------------------------------------------
    feat_isz = jnp.dtype(sub_feats.dtype).itemsize
    scr_isz = jnp.dtype(total_ann_score.dtype).itemsize
    w_isz = jnp.dtype(w_dtype).itemsize
    sub_f = max(8, 32 // feat_isz)          # sublane packing of the feats dtype
    # Per-batch-row VMEM of the double-buffered input/output tiles:
    feats_row = _round_up(N, sub_f) * _round_up(D, 128) * feat_isz
    score_row = _round_up(N, 128) * scr_isz
    out_row = Jp * 4
    per_row_db = 2 * (feats_row + score_row + out_row)
    # Grid-invariant weight/bias, counted double-buffered to stay conservative.
    # TODO(synk): pipeline_mode=pl.Buffered(1) on the weight/bias specs would
    # reclaim one copy once confirmed supported for pallas_call grid pipelines.
    fixed = 2 * (_round_up(D, max(8, 32 // w_isz)) * Jp * w_isz + 8 * Jp * 4)

    if vmem_budget_bytes is None:
        try:   # size the working set per generation (v7x has 64 MiB per TC)
            cap = int(pltpu.get_tpu_info().vmem_capacity_bytes)
        except Exception:
            cap = 64 << 20
        vmem_budget_bytes = min(max(cap // 2 - (8 << 20), 16 << 20), 44 << 20)

    B8 = _round_up(B, 8)
    tb = max((vmem_budget_bytes - fixed) // per_row_db, 8)
    # Keep >= 2 (ideally 4) grid steps so the "parallel" batch axis actually
    # shards across both v7x TensorCores and the DMA pipeline stays overlapped.
    desired_steps = max(1, min(4, B8 // 8))
    tb = min(tb, _round_up(_cdiv(B8, desired_steps), 8), B8)
    tb = (tb // 128 * 128) if tb >= 128 else (tb // 8 * 8)   # MXU-row friendly
    TB = max(tb, 8)
    grid = (_cdiv(B, TB),)

    working_set = fixed + TB * per_row_db
    vmem_limit = int(max(min(working_set + (16 << 20), 48 << 20),
                         working_set + (2 << 20), 32 << 20))

    cost = pl.CostEstimate(
        flops=2 * B * N * D + 2 * B * D * jemb,
        transcendentals=0,
        bytes_accessed=(sub_feats.size * feat_isz
                        + total_ann_score.size * scr_isz
                        + D * Jp * w_isz + Jp * 4 + B * Jp * 4),
    )

    out = pl.pallas_call(
        _subject_decoder_kernel,
        out_shape=jax.ShapeDtypeStruct((B, Jp), jnp.float32),
        grid_spec=pltpu.PrefetchScalarGridSpec(
            num_scalar_prefetch=0,
            grid=grid,
            in_specs=[
                pl.BlockSpec((TB, N), lambda i: (i, 0)),         # scores (2-D)
                pl.BlockSpec((TB, N, D), lambda i: (i, 0, 0)),   # feats
                pl.BlockSpec((D, Jp), lambda i: (0, 0)),         # weight: resident
                pl.BlockSpec((1, Jp), lambda i: (0, 0)),         # bias:   resident
            ],
            out_specs=pl.BlockSpec((TB, Jp), lambda i: (i, 0)),
        ),
        compiler_params=pltpu.CompilerParams(
            dimension_semantics=("parallel",),   # megacore shards the batch grid
            vmem_limit_bytes=vmem_limit,
        ),
        cost_estimate=cost,
    )(total_ann_score, sub_feats, wt, b2)

    return out if Jp == jemb else out[:, :jemb]


def _init_params(key, d_in, jemb_dim):
    # Deterministic init mimicking nn.Linear default: U(+-1/sqrt(fan_in)).
    kw, kb = jax.random.split(key)
    bound = 1.0 / jnp.sqrt(jnp.float32(d_in))
    weight = jax.random.uniform(kw, (jemb_dim, d_in), jnp.float32, -bound, bound)
    bias = jax.random.uniform(kb, (jemb_dim,), jnp.float32, -bound, bound)
    return weight, bias


if __name__ == "__main__":
    key = jax.random.PRNGKey(0)
    k_feats, k_score, k_params = jax.random.split(key, 3)

    # Small shapes consistent with the module: pool5_dim=256, fc7_dim=256,
    # jemb_dim=256; B=24 images, N=8 annotations per image.
    POOL5, FC7, JEMB = 256, 256, 256
    D_IN = POOL5 + FC7
    B, N = 24, 8

    # Dominant operands in bf16 (halves HBM traffic); f32 accumulation in-kernel.
    sub_feats = jax.random.normal(
        k_feats, (B, N, D_IN), jnp.float32).astype(jnp.bfloat16)
    scores = jax.random.normal(k_score, (B, N), jnp.float32)
    total_ann_score = jax.nn.softmax(scores, axis=-1)   # attention-style weights

    weight_f32, bias = _init_params(k_params, D_IN, JEMB)
    weight = weight_f32.astype(jnp.bfloat16)

    out = subject_decoder(sub_feats, total_ann_score, weight, bias)
    out = jax.block_until_ready(out)

    # Pure-JAX reference mirroring the kernel arithmetic (bf16 storage,
    # f32 accumulation).
    feats32 = sub_feats.astype(jnp.float32)
    fuse = jnp.einsum("bn,bnd->bd", total_ann_score, feats32)
    ref = (fuse.astype(jnp.bfloat16).astype(jnp.float32)
           @ weight.astype(jnp.float32).T) + bias

    assert out.shape == (B, JEMB)
    assert out.dtype == jnp.float32
    assert jnp.allclose(out, ref, atol=1e-3, rtol=1e-3), "mismatch vs reference"

    print("KERNEL_OK")
</pallas_src>

<mosaic_0001>
module attributes {stable_mosaic.version = 11 : i64} {
  func.func @_subject_decoder_kernel(%arg0: i32, %arg1: memref<8x8xf32, #tpu.memory_space<vmem>>, %arg2: memref<8x8x512xbf16, #tpu.memory_space<vmem>>, %arg3: memref<512x256xbf16, #tpu.memory_space<vmem>>, %arg4: memref<1x256xf32, #tpu.memory_space<vmem>>, %arg5: memref<8x256xf32, #tpu.memory_space<vmem>>) attributes {dimension_semantics = [#tpu.dimension_semantics<parallel>], iteration_bounds = array<i64: 3>, scalar_prefetch = 0 : i64, scratch_operands = 0 : i64, tpu.core_type = #tpu.core_type<tc>, window_params = [{transform_indices = @transform_0, window_bounds = array<i64: 8, 8>}, {transform_indices = @transform_1, window_bounds = array<i64: 8, 8, 512>}, {pipeline_mode = #tpu.pipeline_mode<synchronous>, transform_indices = @transform_2, window_bounds = array<i64: 512, 256>}, {pipeline_mode = #tpu.pipeline_mode<synchronous>, transform_indices = @transform_3, window_bounds = array<i64: 1, 256>}, {transform_indices = @transform_4, window_bounds = array<i64: 8, 256>}]} {
    %c0 = arith.constant 0 : index
    %c0_0 = arith.constant 0 : index
    %0 = vector.load %arg1[%c0, %c0_0] : memref<8x8xf32, #tpu.memory_space<vmem>>, vector<8x8xf32>
    %1 = vector.extract_strided_slice %0 {offsets = [0, 0], sizes = [8, 1], strides = [1, 1]} : vector<8x8xf32> to vector<8x1xf32>
    %c0_1 = arith.constant 0 : index
    %c0_2 = arith.constant 0 : index
    %c0_3 = arith.constant 0 : index
    %2 = vector.load %arg2[%c0_1, %c0_2, %c0_3] : memref<8x8x512xbf16, #tpu.memory_space<vmem>>, vector<8x1x512xbf16>
    %3 = vector.shape_cast %2 : vector<8x1x512xbf16> to vector<8x512xbf16>
    %4 = arith.extf %3 : vector<8x512xbf16> to vector<8x512xf32>
    %5 = vector.broadcast %1 : vector<8x1xf32> to vector<8x512xf32>
    %6 = arith.mulf %5, %4 : vector<8x512xf32>
    %7 = vector.extract_strided_slice %0 {offsets = [0, 1], sizes = [8, 1], strides = [1, 1]} : vector<8x8xf32> to vector<8x1xf32>
    %c0_4 = arith.constant 0 : index
    %c1 = arith.constant 1 : index
    %c0_5 = arith.constant 0 : index
    %8 = vector.load %arg2[%c0_4, %c1, %c0_5] : memref<8x8x512xbf16, #tpu.memory_space<vmem>>, vector<8x1x512xbf16>
    %9 = vector.shape_cast %8 : vector<8x1x512xbf16> to vector<8x512xbf16>
    %10 = arith.extf %9 : vector<8x512xbf16> to vector<8x512xf32>
    %11 = vector.broadcast %7 : vector<8x1xf32> to vector<8x512xf32>
    %12 = arith.mulf %11, %10 : vector<8x512xf32>
    %13 = arith.addf %6, %12 : vector<8x512xf32>
    %14 = vector.extract_strided_slice %0 {offsets = [0, 2], sizes = [8, 1], strides = [1, 1]} : vector<8x8xf32> to vector<8x1xf32>
    %c0_6 = arith.constant 0 : index
    %c2 = arith.constant 2 : index
    %c0_7 = arith.constant 0 : index
    %15 = vector.load %arg2[%c0_6, %c2, %c0_7] : memref<8x8x512xbf16, #tpu.memory_space<vmem>>, vector<8x1x512xbf16>
    %16 = vector.shape_cast %15 : vector<8x1x512xbf16> to vector<8x512xbf16>
    %17 = arith.extf %16 : vector<8x512xbf16> to vector<8x512xf32>
    %18 = vector.broadcast %14 : vector<8x1xf32> to vector<8x512xf32>
    %19 = arith.mulf %18, %17 : vector<8x512xf32>
    %20 = arith.addf %13, %19 : vector<8x512xf32>
    %21 = vector.extract_strided_slice %0 {offsets = [0, 3], sizes = [8, 1], strides = [1, 1]} : vector<8x8xf32> to vector<8x1xf32>
    %c0_8 = arith.constant 0 : index
    %c3 = arith.constant 3 : index
    %c0_9 = arith.constant 0 : index
    %22 = vector.load %arg2[%c0_8, %c3, %c0_9] : memref<8x8x512xbf16, #tpu.memory_space<vmem>>, vector<8x1x512xbf16>
    %23 = vector.shape_cast %22 : vector<8x1x512xbf16> to vector<8x512xbf16>
    %24 = arith.extf %23 : vector<8x512xbf16> to vector<8x512xf32>
    %25 = vector.broadcast %21 : vector<8x1xf32> to vector<8x512xf32>
    %26 = arith.mulf %25, %24 : vector<8x512xf32>
    %27 = arith.addf %20, %26 : vector<8x512xf32>
    %28 = vector.extract_strided_slice %0 {offsets = [0, 4], sizes = [8, 1], strides = [1, 1]} : vector<8x8xf32> to vector<8x1xf32>
    %c0_10 = arith.constant 0 : index
    %c4 = arith.constant 4 : index
    %c0_11 = arith.constant 0 : index
    %29 = vector.load %arg2[%c0_10, %c4, %c0_11] : memref<8x8x512xbf16, #tpu.memory_space<vmem>>, vector<8x1x512xbf16>
    %30 = vector.shape_cast %29 : vector<8x1x512xbf16> to vector<8x512xbf16>
    %31 = arith.extf %30 : vector<8x512xbf16> to vector<8x512xf32>
    %32 = vector.broadcast %28 : vector<8x1xf32> to vector<8x512xf32>
    %33 = arith.mulf %32, %31 : vector<8x512xf32>
    %34 = arith.addf %27, %33 : vector<8x512xf32>
    %35 = vector.extract_strided_slice %0 {offsets = [0, 5], sizes = [8, 1], strides = [1, 1]} : vector<8x8xf32> to vector<8x1xf32>
    %c0_12 = arith.constant 0 : index
    %c5 = arith.constant 5 : index
    %c0_13 = arith.constant 0 : index
    %36 = vector.load %arg2[%c0_12, %c5, %c0_13] : memref<8x8x512xbf16, #tpu.memory_space<vmem>>, vector<8x1x512xbf16>
    %37 = vector.shape_cast %36 : vector<8x1x512xbf16> to vector<8x512xbf16>
    %38 = arith.extf %37 : vector<8x512xbf16> to vector<8x512xf32>
    %39 = vector.broadcast %35 : vector<8x1xf32> to vector<8x512xf32>
    %40 = arith.mulf %39, %38 : vector<8x512xf32>
    %41 = arith.addf %34, %40 : vector<8x512xf32>
    %42 = vector.extract_strided_slice %0 {offsets = [0, 6], sizes = [8, 1], strides = [1, 1]} : vector<8x8xf32> to vector<8x1xf32>
    %c0_14 = arith.constant 0 : index
    %c6 = arith.constant 6 : index
    %c0_15 = arith.constant 0 : index
    %43 = vector.load %arg2[%c0_14, %c6, %c0_15] : memref<8x8x512xbf16, #tpu.memory_space<vmem>>, vector<8x1x512xbf16>
    %44 = vector.shape_cast %43 : vector<8x1x512xbf16> to vector<8x512xbf16>
    %45 = arith.extf %44 : vector<8x512xbf16> to vector<8x512xf32>
    %46 = vector.broadcast %42 : vector<8x1xf32> to vector<8x512xf32>
    %47 = arith.mulf %46, %45 : vector<8x512xf32>
    %48 = arith.addf %41, %47 : vector<8x512xf32>
    %49 = vector.extract_strided_slice %0 {offsets = [0, 7], sizes = [8, 1], strides = [1, 1]} : vector<8x8xf32> to vector<8x1xf32>
    %c0_16 = arith.constant 0 : index
    %c7 = arith.constant 7 : index
    %c0_17 = arith.constant 0 : index
    %50 = vector.load %arg2[%c0_16, %c7, %c0_17] : memref<8x8x512xbf16, #tpu.memory_space<vmem>>, vector<8x1x512xbf16>
    %51 = vector.shape_cast %50 : vector<8x1x512xbf16> to vector<8x512xbf16>
    %52 = arith.extf %51 : vector<8x512xbf16> to vector<8x512xf32>
    %53 = vector.broadcast %49 : vector<8x1xf32> to vector<8x512xf32>
    %54 = arith.mulf %53, %52 : vector<8x512xf32>
    %55 = arith.addf %48, %54 : vector<8x512xf32>
    %56 = arith.truncf %55 : vector<8x512xf32> to vector<8x512xbf16>
    %c0_18 = arith.constant 0 : index
    %c0_19 = arith.constant 0 : index
    %57 = vector.load %arg3[%c0_18, %c0_19] : memref<512x256xbf16, #tpu.memory_space<vmem>>, vector<512x256xbf16>
    %cst = arith.constant dense<0.000000e+00> : vector<8x256xf32>
    %58 = tpu.matmul %56, %57, %cst {dimension_numbers = #tpu.dot_dimension_numbers<[1], [0], [0], [1], [0, 0, 1, 1], [], []>} : vector<8x512xbf16>, vector<512x256xbf16>, vector<8x256xf32> -> vector<8x256xf32>
    %c0_20 = arith.constant 0 : index
    %c0_21 = arith.constant 0 : index
    %59 = vector.load %arg4[%c0_20, %c0_21] : memref<1x256xf32, #tpu.memory_space<vmem>>, vector<1x256xf32>
    %60 = vector.broadcast %59 : vector<1x256xf32> to vector<8x256xf32>
    %61 = arith.addf %58, %60 : vector<8x256xf32>
    %c0_22 = arith.constant 0 : index
    %c0_23 = arith.constant 0 : index
    %62 = vector.load %arg5[%c0_22, %c0_23] : memref<8x256xf32, #tpu.memory_space<vmem>>, vector<8x256xf32>
    tpu.vector_store %arg5[%c0_22, %c0_23], %61 {strides = array<i32>} : memref<8x256xf32, #tpu.memory_space<vmem>>, vector<8x256xf32>,
    return
  }
  func.func @transform_0(%arg0: i32) -> (i32, i32) {
    %c0_i32 = arith.constant 0 : i32
    %c0_i32_0 = arith.constant 0 : i32
    return %arg0, %c0_i32 : i32, i32
  }
  func.func @transform_1(%arg0: i32) -> (i32, i32, i32) {
    %c0_i32 = arith.constant 0 : i32
    %c0_i32_0 = arith.constant 0 : i32
    %c0_i32_1 = arith.constant 0 : i32
    return %arg0, %c0_i32, %c0_i32_0 : i32, i32, i32
  }
  func.func @transform_2(%arg0: i32) -> (i32, i32) {
    %c0_i32 = arith.constant 0 : i32
    %c0_i32_0 = arith.constant 0 : i32
    %c0_i32_1 = arith.constant 0 : i32
    return %c0_i32, %c0_i32_0 : i32, i32
  }
  func.func @transform_3(%arg0: i32) -> (i32, i32) {
    %c0_i32 = arith.constant 0 : i32
    %c0_i32_0 = arith.constant 0 : i32
    %c0_i32_1 = arith.constant 0 : i32
    return %c0_i32, %c0_i32_0 : i32, i32
  }
  func.func @transform_4(%arg0: i32) -> (i32, i32) {
    %c0_i32 = arith.constant 0 : i32
    %c0_i32_0 = arith.constant 0 : i32
    return %arg0, %c0_i32 : i32, i32
  }
}

</mosaic_0001>

<llo_original>
// kernel: tpu_custom_call.1
$region0: #{tpu_custom_call.1}
  #allocation0 [shape = 'u32[]', space=smem, size = 0x4, offset = 0x4, fixed_abs, tag = 'smem constant byte address 0x4 - core index']
  #allocation1 [shape = 'u32[144,128]{1,0:T(1,128)}', space=vmem, size = 0x12000, scoped, tag = 'internal scratch']
  %s0 = inlined_call_operand.vmem [shape: f32[24,8], index: 0, kind: input, shape index: {}]
  %s1 = inlined_call_operand.hbm [shape: bf16[24,8,512], index: 1, kind: input, shape index: {}]
  %s2 = inlined_call_operand.hbm [shape: bf16[512,256], index: 2, kind: input, shape index: {}]
  %s3 = inlined_call_operand.vmem [shape: f32[1,256], index: 3, kind: input, shape index: {}]
  %s4 = inlined_call_operand.hbm [shape: f32[24,256], index: 4, kind: output, shape index: {}]
  %s5 = sld [smem:[#allocation0]]
  $region57: #{tpu_custom_call.1} parent=0
    _
  %s7 = ssub.s32 1, %s5
  %s8 = scalar_select 0, %s7, %s5
  $region1: #{tpu_custom_call.1} parent=0
    #allocation2 [shape = 'u8[131072]{0}', space=vmem, size = 0x20000, scoped, tag = 'input window, operand 1']
    #allocation3 [shape = 's32[2]{0}', space=sflag, size = 0x8, scoped, tag = 'scoped memory for tpu_custom_call.1']
    #allocation4 [shape = 's32[2]{0}', space=sflag, size = 0x8, scoped, tag = 'scoped memory for tpu_custom_call.1']
    #allocation5 [shape = 'u8[262144]{0}', space=vmem, size = 0x40000, scoped, tag = 'input window, operand 2, single buffered']
    #allocation6 [shape = 's32[1]{0}', space=sflag, size = 0x4, scoped, tag = 'scoped memory for tpu_custom_call.1']
    #allocation7 [shape = 'u8[16384]{0}', space=vmem, size = 0x4000, scoped, tag = 'output window, operand 0']
    %9 = vsyncpa [#allocation3], 0
    %s10 = scalar_lea.sflag [#allocation3], 1
    %11 = vsyncpa %s10, 0
    %12 = vsyncpa [#allocation6], 0
    %13 = vsyncpa [#allocation4], 0
    %s14 = scalar_lea.sflag [#allocation4], 1
    %15 = vsyncpa %s14, 0
    loop: start=0, step=1, limit=5
    $region2: #{tpu_custom_call.1} parent=1 // loop_pre_header
      _
    $region3: #{tpu_custom_call.1} parent=1 // loop_header
      %s17 = sphi 0, %s21
      %p18 = scmp.ge.s32.totalorder %s17, 5
      %s27 = sphi 0, %s29
      %s30 = sphi 0, %s27
      %s31 = sphi 0, %s30
      %s47 = sphi 0, %s31
      %s53 = sphi 0, %s55
      %s56 = sphi 0, %s53
      %s57 = sphi 0, %s56
      %s73 = sphi 0, %s57
      %s77 = sphi 0, %s77
      %s79 = sphi 0, %s77
      %s80 = sphi 0, %s79
      %s94 = sphi 0, %s80
      %s98 = sphi 0, %s98
      %s100 = sphi 0, %s98
      %s101 = sphi 0, %s100
      %s115 = sphi 0, %s101
      %s121 = sphi 0, %s123
      %s124 = sphi 0, %s121
      %s125 = sphi 0, %s124
      %s141 = sphi 0, %s125
    $region4: #{tpu_custom_call.1} parent=1 // loop_header_branch
      %20 = sbr.rel (%p18) target = $region8
    $region5: #{tpu_custom_call.1} parent=1 // loop_body
      %s22 = ssub.s32 %s17, 1
      %s23 = ssub.s32 %s17, 2
      %s24 = sadd.s32 %s17, 1
      %s25 = ssub.s32 %s17, %s24
      %p26 = scmp.eq.s32.totalorder %s25, 0
      %s28 = sadd.s32 %s27, 1
      %s29 = scalar_select %p26, %s27, %s28
      %p32 = pneg %p26
      %p33 = scmp.eq.s32.totalorder %s17, 2
      %p34 = por %p32, %p33
      %p35 = scmp.ne.s32.totalorder %s27, %s30
      %p36 = scmp.eq.s32.totalorder %s17, 0
      %p37 = por %p35, %p36
      %p38 = scmp.ne.s32.totalorder %s27, %s30
      %p39 = scmp.eq.s32.totalorder %s22, 2
      %p40 = por %p38, %p39
      %p41 = scmp.ne.s32.totalorder %s30, %s31
      %p42 = scmp.eq.s32.totalorder %s22, 0
      %p43 = por %p41, %p42
      %p44 = scmp.ne.s32.totalorder %s30, %s31
      %p45 = scmp.eq.s32.totalorder %s23, 2
      %p46 = por %p44, %p45
      %p48 = scmp.ne.s32.totalorder %s31, %s47
      %p49 = scmp.eq.s32.totalorder %s23, 0
      %p50 = por %p48, %p49
      %s51 = ssub.s32 %s17, %s24
      %p52 = scmp.eq.s32.totalorder %s51, 0
      %s54 = sadd.s32 %s53, 1
      %s55 = scalar_select %p52, %s53, %s54
      %p58 = pneg %p52
      %p59 = scmp.eq.s32.totalorder %s17, 2
      %p60 = por %p58, %p59
      %p61 = scmp.ne.s32.totalorder %s53, %s56
      %p62 = scmp.eq.s32.totalorder %s17, 0
      %p63 = por %p61, %p62
      %p64 = scmp.ne.s32.totalorder %s53, %s56
      %p65 = scmp.eq.s32.totalorder %s22, 2
      %p66 = por %p64, %p65
      %p67 = scmp.ne.s32.totalorder %s56, %s57
      %p68 = scmp.eq.s32.totalorder %s22, 0
      %p69 = por %p67, %p68
      %p70 = scmp.ne.s32.totalorder %s56, %s57
      %p71 = scmp.eq.s32.totalorder %s23, 2
      %p72 = por %p70, %p71
      %p74 = scmp.ne.s32.totalorder %s57, %s73
      %p75 = scmp.eq.s32.totalorder %s23, 0
      %p76 = por %p74, %p75
      %s78 = sadd.s32 %s77, 1
      %p81 = scmp.eq.s32.totalorder %s17, 2
      %p82 = scmp.ne.s32.totalorder %s77, %s79
      %p83 = scmp.eq.s32.totalorder %s17, 0
      %p84 = por %p82, %p83
      %p85 = scmp.ne.s32.totalorder %s77, %s79
      %p86 = scmp.eq.s32.totalorder %s22, 2
      %p87 = por %p85, %p86
      %p88 = scmp.ne.s32.totalorder %s79, %s80
      %p89 = scmp.eq.s32.totalorder %s22, 0
      %p90 = por %p88, %p89
      %p91 = scmp.ne.s32.totalorder %s79, %s80
      %p92 = scmp.eq.s32.totalorder %s23, 2
      %p93 = por %p91, %p92
      %p95 = scmp.ne.s32.totalorder %s80, %s94
      %p96 = scmp.eq.s32.totalorder %s23, 0
      %p97 = por %p95, %p96
      %s99 = sadd.s32 %s98, 1
      %p102 = scmp.eq.s32.totalorder %s17, 2
      %p103 = scmp.ne.s32.totalorder %s98, %s100
      %p104 = scmp.eq.s32.totalorder %s17, 0
      %p105 = por %p103, %p104
      %p106 = scmp.ne.s32.totalorder %s98, %s100
      %p107 = scmp.eq.s32.totalorder %s22, 2
      %p108 = por %p106, %p107
      %p109 = scmp.ne.s32.totalorder %s100, %s101
      %p110 = scmp.eq.s32.totalorder %s22, 0
      %p111 = por %p109, %p110
      %p112 = scmp.ne.s32.totalorder %s100, %s101
      %p113 = scmp.eq.s32.totalorder %s23, 2
      %p114 = por %p112, %p113
      %p116 = scmp.ne.s32.totalorder %s101, %s115
      %p117 = scmp.eq.s32.totalorder %s23, 0
      %p118 = por %p116, %p117
      %s119 = ssub.s32 %s17, %s24
      %p120 = scmp.eq.s32.totalorder %s119, 0
      %s122 = sadd.s32 %s121, 1
      %s123 = scalar_select %p120, %s121, %s122
      %p126 = pneg %p120
      %p127 = scmp.eq.s32.totalorder %s17, 2
      %p128 = por %p126, %p127
      %p129 = scmp.ne.s32.totalorder %s121, %s124
      %p130 = scmp.eq.s32.totalorder %s17, 0
      %p131 = por %p129, %p130
      %p132 = scmp.ne.s32.totalorder %s121, %s124
      %p133 = scmp.eq.s32.totalorder %s22, 2
      %p134 = por %p132, %p133
      %p135 = scmp.ne.s32.totalorder %s124, %s125
      %p136 = scmp.eq.s32.totalorder %s22, 0
      %p137 = por %p135, %p136
      %p138 = scmp.ne.s32.totalorder %s124, %s125
      %p139 = scmp.eq.s32.totalorder %s23, 2
      %p140 = por %p138, %p139
      %p142 = scmp.ne.s32.totalorder %s125, %s141
      %p143 = scmp.eq.s32.totalorder %s23, 0
      %p144 = por %p142, %p143
      %p145 = scmp.le.s32.totalorder 1, %s17
      %p146 = scmp.lt.s32.totalorder %s17, 4
      %p147 = pnand %p145, %p146
      %p148 = pneg %p147
      // Predicated region
      $region9: #{tpu_custom_call.1} parent=5 // pred_check
        _
      $region10: #{tpu_custom_call.1} parent=5 // pred_check_branch
        %150 = sbr.rel (%p147) target = $region12
      $region11: #{tpu_custom_call.1} parent=5 // pred_region
        %s151 = ssub.s32 %s17, 1
        // Predicated region
        $region13: #{tpu_custom_call.1} parent=11 // pred_check
          %p152 = pneg %p90
        $region14: #{tpu_custom_call.1} parent=11 // pred_check_branch
          %154 = sbr.rel (%p152) target = $region16
        $region15: #{tpu_custom_call.1} parent=11 // pred_region
          %s156 = ssub.s32 8192, 8192
          %157 = vsyncadd [#allocation6], %s156
          %s158 = sshll.u32 [#allocation5], 4
          %s159 = int_to_ptr.vmem [resolvable:$true] %s158
          %164 = dma.hbm_to_vmem [thread:$0]  %s2, 8192, %s159, [#allocation6], 128, 128, 8
        $region16: #{tpu_custom_call.1} parent=11 // pred_fallthru
          _
        // Predicated region
        $region17: #{tpu_custom_call.1} parent=11 // pred_check
          %p165 = pneg %p111
        $region18: #{tpu_custom_call.1} parent=11 // pred_check_branch
          %167 = sbr.rel (%p165) target = $region20
        $region19: #{tpu_custom_call.1} parent=11 // pred_region
          _
        $region20: #{tpu_custom_call.1} parent=11 // pred_fallthru
          _
      $region12: #{tpu_custom_call.1} parent=5 // pred_fallthru
        _
      %p168 = scmp.lt.s32.totalorder %s17, 3
      // Predicated region
      $region21: #{tpu_custom_call.1} parent=5 // pred_check
        %p169 = pneg %p168
      $region22: #{tpu_custom_call.1} parent=5 // pred_check_branch
        %171 = sbr.rel (%p169) target = $region24
      $region23: #{tpu_custom_call.1} parent=5 // pred_region
        // Predicated region
        $region25: #{tpu_custom_call.1} parent=23 // pred_check
          %p172 = pneg %p37
        $region26: #{tpu_custom_call.1} parent=23 // pred_check_branch
          %174 = sbr.rel (%p172) target = $region28
        $region27: #{tpu_custom_call.1} parent=23 // pred_region
          %p175 = scmp.lt.s32.totalorder %s17, 2
          %s176 = scalar_select %p175, %s17, 2
          %s177 = smul.addr %s176, 8
          %s178 = scalar_lea.vmem %s0, %s177
        $region28: #{tpu_custom_call.1} parent=23 // pred_fallthru
          _
        // Predicated region
        $region29: #{tpu_custom_call.1} parent=23 // pred_check
          %p179 = pneg %p63
        $region30: #{tpu_custom_call.1} parent=23 // pred_check_branch
          %181 = sbr.rel (%p179) target = $region32
        $region31: #{tpu_custom_call.1} parent=23 // pred_region
          %s182 = sand.u32 %s53, 1
          %s183 = scalar_lea.sflag [#allocation3], %s182
          %s184 = sand.u32 %s53, 1
          %s185 = smul.addr %s184, 128
          %s186 = scalar_lea.vmem [#allocation2], %s185
          %s187 = smul.u32 8, %s17
          %s189 = ssub.s32 2048, 2048
          %190 = vsyncadd %s183, %s189
          %s191 = smul.addr %s187, 4
          %s192 = smul.addr %s191, 64
          %s193 = scalar_lea.hbm %s1, %s192
          %s194 = sshll.u32 %s186, 4
          %s195 = int_to_ptr.vmem [resolvable:$true] %s194
          %200 = dma.hbm_to_vmem [thread:$0]  %s193, 2048, %s195, %s183, 256, 256, 16
        $region32: #{tpu_custom_call.1} parent=23 // pred_fallthru
          _
      $region24: #{tpu_custom_call.1} parent=5 // pred_fallthru
        _
      %p201 = scmp.le.s32.totalorder 1, %s17
      %p202 = scmp.lt.s32.totalorder %s17, 4
      %p203 = pnand %p201, %p202
      %p204 = pneg %p203
      // Predicated region
      $region33: #{tpu_custom_call.1} parent=5 // pred_check
        _
      $region34: #{tpu_custom_call.1} parent=5 // pred_check_branch
        %206 = sbr.rel (%p203) target = $region36
      $region35: #{tpu_custom_call.1} parent=5 // pred_region
        %s207 = ssub.s32 %s17, 1
        %s208 = sand.u32 %s56, 1
        %s209 = scalar_lea.sflag [#allocation3], %s208
        %s210 = sand.u32 %s56, 1
        %s211 = smul.addr %s210, 128
        %s212 = scalar_lea.vmem [#allocation2], %s211
        // Predicated region
        $region37: #{tpu_custom_call.1} parent=35 // pred_check
          %p213 = pneg %p69
        $region38: #{tpu_custom_call.1} parent=35 // pred_check_branch
          %215 = sbr.rel (%p213) target = $region40
        $region39: #{tpu_custom_call.1} parent=35 // pred_region
          %216 = dma.done %s209, 2048
        $region40: #{tpu_custom_call.1} parent=35 // pred_fallthru
          _
        // Predicated region
        $region41: #{tpu_custom_call.1} parent=35 // pred_check
          %p217 = pneg %p90
        $region42: #{tpu_custom_call.1} parent=35 // pred_check_branch
          %219 = sbr.rel (%p217) target = $region44
        $region43: #{tpu_custom_call.1} parent=35 // pred_region
          %220 = dma.done [#allocation6], 8192
        $region44: #{tpu_custom_call.1} parent=35 // pred_fallthru
          _
        %p221 = scmp.lt.s32.totalorder %s22, 2
        %s222 = scalar_select %p221, %s22, 2
        %s223 = smul.addr %s222, 8
        %s224 = scalar_lea.vmem %s0, %s223
        %p225 = pneg %p43
        %p226 = pneg %p40
        %s227 = sand.u32 %s56, 1
        %s228 = scalar_lea.sflag [#allocation3], %s227
        %s229 = sand.u32 %s56, 1
        %s230 = smul.addr %s229, 128
        %s231 = scalar_lea.vmem [#allocation2], %s230
        %p232 = pneg %p69
        %p233 = pneg %p66
        %p234 = pneg %p90
        %p235 = pneg %p87
        %p236 = pneg %p111
        %p237 = pneg %p108
        %p238 = pneg %p137
        %p239 = pneg %p134
        %s240 = sand.u32 %s124, 1
        %s241 = scalar_lea.sflag [#allocation4], %s240
        %s242 = sand.u32 %s124, 1
        %s243 = smul.addr %s242, 16
        %s244 = scalar_lea.vmem [#allocation7], %s243
        %p245 = scmp.lt.s32.totalorder %s22, 2
        %s246 = scalar_select %p245, %s22, 2
        %s247 = smul.addr %s246, 8
        %s248 = scalar_lea.vmem %s0, %s247
        %s249 = smul.u32 8, %s22
        %v250 = vld [vmem:[%s248] sm:$0xff]
        %v251 = vld [vmem:[%s212] sm:$0x11]
        %v252 = vld [vmem:[%s212 + $0x8] sm:$0x11]
        %v253 = vld [vmem:[%s212 + $0x10] sm:$0x11]
        %v254 = vld [vmem:[%s212 + $0x18] sm:$0x11]
        %v255 = vld [vmem:[%s212 + $0x20] sm:$0x11]
        %v256 = vld [vmem:[%s212 + $0x28] sm:$0x11]
        %v257 = vld [vmem:[%s212 + $0x30] sm:$0x11]
        %v258 = vld [vmem:[%s212 + $0x38] sm:$0x11]
        %v259 = vld [vmem:[%s212 + $0x40] sm:$0x11]
        %v260 = vld [vmem:[%s212 + $0x48] sm:$0x11]
        %v261 = vld [vmem:[%s212 + $0x50] sm:$0x11]
        %v262 = vld [vmem:[%s212 + $0x58] sm:$0x11]
        %v263 = vld [vmem:[%s212 + $0x60] sm:$0x11]
        %v264 = vld [vmem:[%s212 + $0x68] sm:$0x11]
        %v265 = vld [vmem:[%s212 + $0x70] sm:$0x11]
        %v266 = vld [vmem:[%s212 + $0x78] sm:$0x11]
        %v267 = vunpack.c.l.bf16 %v251
        %v268 = vunpack.c.h.bf16 %v251
        %v269 = vunpack.c.l.bf16 %v252
        %v270 = vunpack.c.h.bf16 %v252
        %v271 = vunpack.c.l.bf16 %v253
        %v272 = vunpack.c.h.bf16 %v253
        %v273 = vunpack.c.l.bf16 %v254
        %v274 = vunpack.c.h.bf16 %v254
        %v275 = vunpack.c.l.bf16 %v255
        %v276 = vunpack.c.h.bf16 %v255
        %v277 = vunpack.c.l.bf16 %v256
        %v278 = vunpack.c.h.bf16 %v256
        %v279 = vunpack.c.l.bf16 %v257
        %v280 = vunpack.c.h.bf16 %v257
        %v281 = vunpack.c.l.bf16 %v258
        %v282 = vunpack.c.h.bf16 %v258
        %v283 = vunpack.c.l.bf16 %v259
        %v284 = vunpack.c.h.bf16 %v259
        %v285 = vunpack.c.l.bf16 %v260
        %v286 = vunpack.c.h.bf16 %v260
        %v287 = vunpack.c.l.bf16 %v261
        %v288 = vunpack.c.h.bf16 %v261
        %v289 = vunpack.c.l.bf16 %v262
        %v290 = vunpack.c.h.bf16 %v262
        %v291 = vunpack.c.l.bf16 %v263
        %v292 = vunpack.c.h.bf16 %v263
        %v293 = vunpack.c.l.bf16 %v264
        %v294 = vunpack.c.h.bf16 %v264
        %v295 = vunpack.c.l.bf16 %v265
        %v296 = vunpack.c.h.bf16 %v265
        %v297 = vunpack.c.l.bf16 %v266
        %v298 = vunpack.c.h.bf16 %v266
        %300 = vset.pattern.permute.xlu0 0
        %301 = vperm.xlu0 %300, %v250
        %v302 = vpop.permute.xlu0 %301
        %v336 = vrot.slane %v271, 7
        %vm337 = vcmask 1041409
        %v338 = vsel %vm337, %v336, %v267
        %v339 = vrot.slane %v275, 6
        %vm340 = vcmask 1042434
        %v341 = vsel %vm340, %v339, %v338
        %v342 = vrot.slane %v279, 5
        %vm343 = vcmask 1043459
        %v344 = vsel %vm343, %v342, %v341
        %v345 = vrot.slane %v283, 4
        %vm346 = vcmask 1044484
        %v347 = vsel %vm346, %v345, %v344
        %v348 = vrot.slane %v287, 3
        %vm349 = vcmask 1045509
        %v350 = vsel %vm349, %v348, %v347
        %v351 = vrot.slane %v291, 2
        %vm352 = vcmask 1046534
        %v353 = vsel %vm352, %v351, %v350
        %v354 = vrot.slane %v295, 1
        %vm355 = vcmask 1047559
        %v356 = vsel %vm355, %v354, %v353
        %v357 = vrot.slane %v272, 7
        %v358 = vsel %vm337, %v357, %v268
        %v359 = vrot.slane %v276, 6
        %v360 = vsel %vm340, %v359, %v358
        %v361 = vrot.slane %v280, 5
        %v362 = vsel %vm343, %v361, %v360
        %v363 = vrot.slane %v284, 4
        %v364 = vsel %vm346, %v363, %v362
        %v365 = vrot.slane %v288, 3
        %v366 = vsel %vm349, %v365, %v364
        %v367 = vrot.slane %v292, 2
        %v368 = vsel %vm352, %v367, %v366
        %v369 = vrot.slane %v296, 1
        %v370 = vsel %vm355, %v369, %v368
        %v371 = vrot.slane %v273, 7
        %v372 = vsel %vm337, %v371, %v269
        %v373 = vrot.slane %v277, 6
        %v374 = vsel %vm340, %v373, %v372
        %v375 = vrot.slane %v281, 5
        %v376 = vsel %vm343, %v375, %v374
        %v377 = vrot.slane %v285, 4
        %v378 = vsel %vm346, %v377, %v376
        %v379 = vrot.slane %v289, 3
        %v380 = vsel %vm349, %v379, %v378
        %v381 = vrot.slane %v293, 2
        %v382 = vsel %vm352, %v381, %v380
        %v383 = vrot.slane %v297, 1
        %v384 = vsel %vm355, %v383, %v382
        %v385 = vrot.slane %v274, 7
        %v386 = vsel %vm337, %v385, %v270
        %v387 = vrot.slane %v278, 6
        %v388 = vsel %vm340, %v387, %v386
        %v389 = vrot.slane %v282, 5
        %v390 = vsel %vm343, %v389, %v388
        %v391 = vrot.slane %v286, 4
        %v392 = vsel %vm346, %v391, %v390
        %v393 = vrot.slane %v290, 3
        %v394 = vsel %vm349, %v393, %v392
        %v395 = vrot.slane %v294, 2
        %v396 = vsel %vm352, %v395, %v394
        %v397 = vrot.slane %v298, 1
        %v398 = vsel %vm355, %v397, %v396
        %v403 = vmul.f32 %v302, %v356
        %v404 = vmul.f32 %v302, %v370
        %v405 = vmul.f32 %v302, %v384
        %v406 = vmul.f32 %v302, %v398
        %407 = vset.pattern.permute.xlu0 1
        %408 = vperm.xlu0 %407, %v250
        %v409 = vpop.permute.xlu0 %408
        %v411 = vrot.slane %v267, 1
        %v412 = vsel %vm337, %v271, %v411
        %v413 = vrot.slane %v275, 7
        %v414 = vsel %vm340, %v413, %v412
        %v415 = vrot.slane %v279, 6
        %v416 = vsel %vm343, %v415, %v414
        %v417 = vrot.slane %v283, 5
        %v418 = vsel %vm346, %v417, %v416
        %v419 = vrot.slane %v287, 4
        %v420 = vsel %vm349, %v419, %v418
        %v421 = vrot.slane %v291, 3
        %v422 = vsel %vm352, %v421, %v420
        %v423 = vrot.slane %v295, 2
        %v424 = vsel %vm355, %v423, %v422
        %v425 = vrot.slane %v268, 1
        %v426 = vsel %vm337, %v272, %v425
        %v427 = vrot.slane %v276, 7
        %v428 = vsel %vm340, %v427, %v426
        %v429 = vrot.slane %v280, 6
        %v430 = vsel %vm343, %v429, %v428
        %v431 = vrot.slane %v284, 5
        %v432 = vsel %vm346, %v431, %v430
        %v433 = vrot.slane %v288, 4
        %v434 = vsel %vm349, %v433, %v432
        %v435 = vrot.slane %v292, 3
        %v436 = vsel %vm352, %v435, %v434
        %v437 = vrot.slane %v296, 2
        %v438 = vsel %vm355, %v437, %v436
        %v439 = vrot.slane %v269, 1
        %v440 = vsel %vm337, %v273, %v439
        %v441 = vrot.slane %v277, 7
        %v442 = vsel %vm340, %v441, %v440
        %v443 = vrot.slane %v281, 6
        %v444 = vsel %vm343, %v443, %v442
        %v445 = vrot.slane %v285, 5
        %v446 = vsel %vm346, %v445, %v444
        %v447 = vrot.slane %v289, 4
        %v448 = vsel %vm349, %v447, %v446
        %v449 = vrot.slane %v293, 3
        %v450 = vsel %vm352, %v449, %v448
        %v451 = vrot.slane %v297, 2
        %v452 = vsel %vm355, %v451, %v450
        %v453 = vrot.slane %v270, 1
        %v454 = vsel %vm337, %v274, %v453
        %v455 = vrot.slane %v278, 7
        %v456 = vsel %vm340, %v455, %v454
        %v457 = vrot.slane %v282, 6
        %v458 = vsel %vm343, %v457, %v456
        %v459 = vrot.slane %v286, 5
        %v460 = vsel %vm346, %v459, %v458
        %v461 = vrot.slane %v290, 4
        %v462 = vsel %vm349, %v461, %v460
        %v463 = vrot.slane %v294, 3
        %v464 = vsel %vm352, %v463, %v462
        %v465 = vrot.slane %v298, 2
        %v466 = vsel %vm355, %v465, %v464
        %v471 = vmul.f32 %v409, %v424
        %v472 = vmul.f32 %v409, %v438
        %v473 = vmul.f32 %v409, %v452
        %v474 = vmul.f32 %v409, %v466
        %v475 = vadd.f32 %v403, %v471
        %v476 = vadd.f32 %v404, %v472
        %v477 = vadd.f32 %v405, %v473
        %v478 = vadd.f32 %v406, %v474
        %v479 = vld [vmem:[%s212] sm:$0x22]
        %v480 = vld [vmem:[%s212 + $0x8] sm:$0x22]
        %v481 = vld [vmem:[%s212 + $0x10] sm:$0x22]
        %v482 = vld [vmem:[%s212 + $0x18] sm:$0x22]
        %v483 = vld [vmem:[%s212 + $0x20] sm:$0x22]
        %v484 = vld [vmem:[%s212 + $0x28] sm:$0x22]
        %v485 = vld [vmem:[%s212 + $0x30] sm:$0x22]
        %v486 = vld [vmem:[%s212 + $0x38] sm:$0x22]
        %v487 = vld [vmem:[%s212 + $0x40] sm:$0x22]
        %v488 = vld [vmem:[%s212 + $0x48] sm:$0x22]
        %v489 = vld [vmem:[%s212 + $0x50] sm:$0x22]
        %v490 = vld [vmem:[%s212 + $0x58] sm:$0x22]
        %v491 = vld [vmem:[%s212 + $0x60] sm:$0x22]
        %v492 = vld [vmem:[%s212 + $0x68] sm:$0x22]
        %v493 = vld [vmem:[%s212 + $0x70] sm:$0x22]
        %v494 = vld [vmem:[%s212 + $0x78] sm:$0x22]
        %v495 = vunpack.c.l.bf16 %v479
        %v496 = vunpack.c.h.bf16 %v479
        %v497 = vunpack.c.l.bf16 %v480
        %v498 = vunpack.c.h.bf16 %v480
        %v499 = vunpack.c.l.bf16 %v481
        %v500 = vunpack.c.h.bf16 %v481
        %v501 = vunpack.c.l.bf16 %v482
        %v502 = vunpack.c.h.bf16 %v482
        %v503 = vunpack.c.l.bf16 %v483
        %v504 = vunpack.c.h.bf16 %v483
        %v505 = vunpack.c.l.bf16 %v484
        %v506 = vunpack.c.h.bf16 %v484
        %v507 = vunpack.c.l.bf16 %v485
        %v508 = vunpack.c.h.bf16 %v485
        %v509 = vunpack.c.l.bf16 %v486
        %v510 = vunpack.c.h.bf16 %v486
        %v511 = vunpack.c.l.bf16 %v487
        %v512 = vunpack.c.h.bf16 %v487
        %v513 = vunpack.c.l.bf16 %v488
        %v514 = vunpack.c.h.bf16 %v488
        %v515 = vunpack.c.l.bf16 %v489
        %v516 = vunpack.c.h.bf16 %v489
        %v517 = vunpack.c.l.bf16 %v490
        %v518 = vunpack.c.h.bf16 %v490
        %v519 = vunpack.c.l.bf16 %v491
        %v520 = vunpack.c.h.bf16 %v491
        %v521 = vunpack.c.l.bf16 %v492
        %v522 = vunpack.c.h.bf16 %v492
        %v523 = vunpack.c.l.bf16 %v493
        %v524 = vunpack.c.h.bf16 %v493
        %v525 = vunpack.c.l.bf16 %v494
        %v526 = vunpack.c.h.bf16 %v494
        %527 = vset.pattern.permute.xlu0 2
        %528 = vperm.xlu0 %527, %v250
        %v529 = vpop.permute.xlu0 %528
        %v563 = vrot.slane %v495, 2
        %v564 = vrot.slane %v499, 1
        %v565 = vsel %vm337, %v564, %v563
        %v566 = vsel %vm340, %v503, %v565
        %v567 = vrot.slane %v507, 7
        %v568 = vsel %vm343, %v567, %v566
        %v569 = vrot.slane %v511, 6
        %v570 = vsel %vm346, %v569, %v568
        %v571 = vrot.slane %v515, 5
        %v572 = vsel %vm349, %v571, %v570
        %v573 = vrot.slane %v519, 4
        %v574 = vsel %vm352, %v573, %v572
        %v575 = vrot.slane %v523, 3
        %v576 = vsel %vm355, %v575, %v574
        %v577 = vrot.slane %v496, 2
        %v578 = vrot.slane %v500, 1
        %v579 = vsel %vm337, %v578, %v577
        %v580 = vsel %vm340, %v504, %v579
        %v581 = vrot.slane %v508, 7
        %v582 = vsel %vm343, %v581, %v580
        %v583 = vrot.slane %v512, 6
        %v584 = vsel %vm346, %v583, %v582
        %v585 = vrot.slane %v516, 5
        %v586 = vsel %vm349, %v585, %v584
        %v587 = vrot.slane %v520, 4
        %v588 = vsel %vm352, %v587, %v586
        %v589 = vrot.slane %v524, 3
        %v590 = vsel %vm355, %v589, %v588
        %v591 = vrot.slane %v497, 2
        %v592 = vrot.slane %v501, 1
        %v593 = vsel %vm337, %v592, %v591
        %v594 = vsel %vm340, %v505, %v593
        %v595 = vrot.slane %v509, 7
        %v596 = vsel %vm343, %v595, %v594
        %v597 = vrot.slane %v513, 6
        %v598 = vsel %vm346, %v597, %v596
        %v599 = vrot.slane %v517, 5
        %v600 = vsel %vm349, %v599, %v598
        %v601 = vrot.slane %v521, 4
        %v602 = vsel %vm352, %v601, %v600
        %v603 = vrot.slane %v525, 3
        %v604 = vsel %vm355, %v603, %v602
        %v605 = vrot.slane %v498, 2
        %v606 = vrot.slane %v502, 1
        %v607 = vsel %vm337, %v606, %v605
        %v608 = vsel %vm340, %v506, %v607
        %v609 = vrot.slane %v510, 7
        %v610 = vsel %vm343, %v609, %v608
        %v611 = vrot.slane %v514, 6
        %v612 = vsel %vm346, %v611, %v610
        %v613 = vrot.slane %v518, 5
        %v614 = vsel %vm349, %v613, %v612
        %v615 = vrot.slane %v522, 4
        %v616 = vsel %vm352, %v615, %v614
        %v617 = vrot.slane %v526, 3
        %v618 = vsel %vm355, %v617, %v616
        %v623 = vmul.f32 %v529, %v576
        %v624 = vmul.f32 %v529, %v590
        %v625 = vmul.f32 %v529, %v604
        %v626 = vmul.f32 %v529, %v618
        %v627 = vadd.f32 %v475, %v623
        %v628 = vadd.f32 %v476, %v624
        %v629 = vadd.f32 %v477, %v625
        %v630 = vadd.f32 %v478, %v626
        %631 = vset.pattern.permute.xlu0 3
        %632 = vperm.xlu0 %631, %v250
        %v633 = vpop.permute.xlu0 %632
        %v635 = vrot.slane %v495, 3
        %v636 = vrot.slane %v499, 2
        %v637 = vsel %vm337, %v636, %v635
        %v638 = vrot.slane %v503, 1
        %v639 = vsel %vm340, %v638, %v637
        %v640 = vsel %vm343, %v507, %v639
        %v641 = vrot.slane %v511, 7
        %v642 = vsel %vm346, %v641, %v640
        %v643 = vrot.slane %v515, 6
        %v644 = vsel %vm349, %v643, %v642
        %v645 = vrot.slane %v519, 5
        %v646 = vsel %vm352, %v645, %v644
        %v647 = vrot.slane %v523, 4
        %v648 = vsel %vm355, %v647, %v646
        %v649 = vrot.slane %v496, 3
        %v650 = vrot.slane %v500, 2
        %v651 = vsel %vm337, %v650, %v649
        %v652 = vrot.slane %v504, 1
        %v653 = vsel %vm340, %v652, %v651
        %v654 = vsel %vm343, %v508, %v653
        %v655 = vrot.slane %v512, 7
        %v656 = vsel %vm346, %v655, %v654
        %v657 = vrot.slane %v516, 6
        %v658 = vsel %vm349, %v657, %v656
        %v659 = vrot.slane %v520, 5
        %v660 = vsel %vm352, %v659, %v658
        %v661 = vrot.slane %v524, 4
        %v662 = vsel %vm355, %v661, %v660
        %v663 = vrot.slane %v497, 3
        %v664 = vrot.slane %v501, 2
        %v665 = vsel %vm337, %v664, %v663
        %v666 = vrot.slane %v505, 1
        %v667 = vsel %vm340, %v666, %v665
        %v668 = vsel %vm343, %v509, %v667
        %v669 = vrot.slane %v513, 7
        %v670 = vsel %vm346, %v669, %v668
        %v671 = vrot.slane %v517, 6
        %v672 = vsel %vm349, %v671, %v670
        %v673 = vrot.slane %v521, 5
        %v674 = vsel %vm352, %v673, %v672
        %v675 = vrot.slane %v525, 4
        %v676 = vsel %vm355, %v675, %v674
        %v677 = vrot.slane %v498, 3
        %v678 = vrot.slane %v502, 2
        %v679 = vsel %vm337, %v678, %v677
        %v680 = vrot.slane %v506, 1
        %v681 = vsel %vm340, %v680, %v679
        %v682 = vsel %vm343, %v510, %v681
        %v683 = vrot.slane %v514, 7
        %v684 = vsel %vm346, %v683, %v682
        %v685 = vrot.slane %v518, 6
        %v686 = vsel %vm349, %v685, %v684
        %v687 = vrot.slane %v522, 5
        %v688 = vsel %vm352, %v687, %v686
        %v689 = vrot.slane %v526, 4
        %v690 = vsel %vm355, %v689, %v688
        %v695 = vmul.f32 %v633, %v648
        %v696 = vmul.f32 %v633, %v662
        %v697 = vmul.f32 %v633, %v676
        %v698 = vmul.f32 %v633, %v690
        %v699 = vadd.f32 %v627, %v695
        %v700 = vadd.f32 %v628, %v696
        %v701 = vadd.f32 %v629, %v697
        %v702 = vadd.f32 %v630, %v698
        %v703 = vld [vmem:[%s212] sm:$0x44]
        %v704 = vld [vmem:[%s212 + $0x8] sm:$0x44]
        %v705 = vld [vmem:[%s212 + $0x10] sm:$0x44]
        %v706 = vld [vmem:[%s212 + $0x18] sm:$0x44]
        %v707 = vld [vmem:[%s212 + $0x20] sm:$0x44]
        %v708 = vld [vmem:[%s212 + $0x28] sm:$0x44]
        %v709 = vld [vmem:[%s212 + $0x30] sm:$0x44]
        %v710 = vld [vmem:[%s212 + $0x38] sm:$0x44]
        %v711 = vld [vmem:[%s212 + $0x40] sm:$0x44]
        %v712 = vld [vmem:[%s212 + $0x48] sm:$0x44]
        %v713 = vld [vmem:[%s212 + $0x50] sm:$0x44]
        %v714 = vld [vmem:[%s212 + $0x58] sm:$0x44]
        %v715 = vld [vmem:[%s212 + $0x60] sm:$0x44]
        %v716 = vld [vmem:[%s212 + $0x68] sm:$0x44]
        %v717 = vld [vmem:[%s212 + $0x70] sm:$0x44]
        %v718 = vld [vmem:[%s212 + $0x78] sm:$0x44]
        %v719 = vunpack.c.l.bf16 %v703
        %v720 = vunpack.c.h.bf16 %v703
        %v721 = vunpack.c.l.bf16 %v704
        %v722 = vunpack.c.h.bf16 %v704
        %v723 = vunpack.c.l.bf16 %v705
        %v724 = vunpack.c.h.bf16 %v705
        %v725 = vunpack.c.l.bf16 %v706
        %v726 = vunpack.c.h.bf16 %v706
        %v727 = vunpack.c.l.bf16 %v707
        %v728 = vunpack.c.h.bf16 %v707
        %v729 = vunpack.c.l.bf16 %v708
        %v730 = vunpack.c.h.bf16 %v708
        %v731 = vunpack.c.l.bf16 %v709
        %v732 = vunpack.c.h.bf16 %v709
        %v733 = vunpack.c.l.bf16 %v710
        %v734 = vunpack.c.h.bf16 %v710
        %v735 = vunpack.c.l.bf16 %v711
        %v736 = vunpack.c.h.bf16 %v711
        %v737 = vunpack.c.l.bf16 %v712
        %v738 = vunpack.c.h.bf16 %v712
        %v739 = vunpack.c.l.bf16 %v713
        %v740 = vunpack.c.h.bf16 %v713
        %v741 = vunpack.c.l.bf16 %v714
        %v742 = vunpack.c.h.bf16 %v714
        %v743 = vunpack.c.l.bf16 %v715
        %v744 = vunpack.c.h.bf16 %v715
        %v745 = vunpack.c.l.bf16 %v716
        %v746 = vunpack.c.h.bf16 %v716
        %v747 = vunpack.c.l.bf16 %v717
        %v748 = vunpack.c.h.bf16 %v717
        %v749 = vunpack.c.l.bf16 %v718
        %v750 = vunpack.c.h.bf16 %v718
        %751 = vset.pattern.permute.xlu0 4
        %752 = vperm.xlu0 %751, %v250
        %v753 = vpop.permute.xlu0 %752
        %v787 = vrot.slane %v719, 4
        %v788 = vrot.slane %v723, 3
        %v789 = vsel %vm337, %v788, %v787
        %v790 = vrot.slane %v727, 2
        %v791 = vsel %vm340, %v790, %v789
        %v792 = vrot.slane %v731, 1
        %v793 = vsel %vm343, %v792, %v791
        %v794 = vsel %vm346, %v735, %v793
        %v795 = vrot.slane %v739, 7
        %v796 = vsel %vm349, %v795, %v794
        %v797 = vrot.slane %v743, 6
        %v798 = vsel %vm352, %v797, %v796
        %v799 = vrot.slane %v747, 5
        %v800 = vsel %vm355, %v799, %v798
        %v801 = vrot.slane %v720, 4
        %v802 = vrot.slane %v724, 3
        %v803 = vsel %vm337, %v802, %v801
        %v804 = vrot.slane %v728, 2
        %v805 = vsel %vm340, %v804, %v803
        %v806 = vrot.slane %v732, 1
        %v807 = vsel %vm343, %v806, %v805
        %v808 = vsel %vm346, %v736, %v807
        %v809 = vrot.slane %v740, 7
        %v810 = vsel %vm349, %v809, %v808
        %v811 = vrot.slane %v744, 6
        %v812 = vsel %vm352, %v811, %v810
        %v813 = vrot.slane %v748, 5
        %v814 = vsel %vm355, %v813, %v812
        %v815 = vrot.slane %v721, 4
        %v816 = vrot.slane %v725, 3
        %v817 = vsel %vm337, %v816, %v815
        %v818 = vrot.slane %v729, 2
        %v819 = vsel %vm340, %v818, %v817
        %v820 = vrot.slane %v733, 1
        %v821 = vsel %vm343, %v820, %v819
        %v822 = vsel %vm346, %v737, %v821
        %v823 = vrot.slane %v741, 7
        %v824 = vsel %vm349, %v823, %v822
        %v825 = vrot.slane %v745, 6
        %v826 = vsel %vm352, %v825, %v824
        %v827 = vrot.slane %v749, 5
        %v828 = vsel %vm355, %v827, %v826
        %v829 = vrot.slane %v722, 4
        %v830 = vrot.slane %v726, 3
        %v831 = vsel %vm337, %v830, %v829
        %v832 = vrot.slane %v730, 2
        %v833 = vsel %vm340, %v832, %v831
        %v834 = vrot.slane %v734, 1
        %v835 = vsel %vm343, %v834, %v833
        %v836 = vsel %vm346, %v738, %v835
        %v837 = vrot.slane %v742, 7
        %v838 = vsel %vm349, %v837, %v836
        %v839 = vrot.slane %v746, 6
        %v840 = vsel %vm352, %v839, %v838
        %v841 = vrot.slane %v750, 5
        %v842 = vsel %vm355, %v841, %v840
        %v847 = vmul.f32 %v753, %v800
        %v848 = vmul.f32 %v753, %v814
        %v849 = vmul.f32 %v753, %v828
        %v850 = vmul.f32 %v753, %v842
        %v851 = vadd.f32 %v699, %v847
        %v852 = vadd.f32 %v700, %v848
        %v853 = vadd.f32 %v701, %v849
        %v854 = vadd.f32 %v702, %v850
        %855 = vset.pattern.permute.xlu0 5
        %856 = vperm.xlu0 %855, %v250
        %v857 = vpop.permute.xlu0 %856
        %v859 = vrot.slane %v719, 5
        %v860 = vrot.slane %v723, 4
        %v861 = vsel %vm337, %v860, %v859
        %v862 = vrot.slane %v727, 3
        %v863 = vsel %vm340, %v862, %v861
        %v864 = vrot.slane %v731, 2
        %v865 = vsel %vm343, %v864, %v863
        %v866 = vrot.slane %v735, 1
        %v867 = vsel %vm346, %v866, %v865
        %v868 = vsel %vm349, %v739, %v867
        %v869 = vrot.slane %v743, 7
        %v870 = vsel %vm352, %v869, %v868
        %v871 = vrot.slane %v747, 6
        %v872 = vsel %vm355, %v871, %v870
        %v873 = vrot.slane %v720, 5
        %v874 = vrot.slane %v724, 4
        %v875 = vsel %vm337, %v874, %v873
        %v876 = vrot.slane %v728, 3
        %v877 = vsel %vm340, %v876, %v875
        %v878 = vrot.slane %v732, 2
        %v879 = vsel %vm343, %v878, %v877
        %v880 = vrot.slane %v736, 1
        %v881 = vsel %vm346, %v880, %v879
        %v882 = vsel %vm349, %v740, %v881
        %v883 = vrot.slane %v744, 7
        %v884 = vsel %vm352, %v883, %v882
        %v885 = vrot.slane %v748, 6
        %v886 = vsel %vm355, %v885, %v884
        %v887 = vrot.slane %v721, 5
        %v888 = vrot.slane %v725, 4
        %v889 = vsel %vm337, %v888, %v887
        %v890 = vrot.slane %v729, 3
        %v891 = vsel %vm340, %v890, %v889
        %v892 = vrot.slane %v733, 2
        %v893 = vsel %vm343, %v892, %v891
        %v894 = vrot.slane %v737, 1
        %v895 = vsel %vm346, %v894, %v893
        %v896 = vsel %vm349, %v741, %v895
        %v897 = vrot.slane %v745, 7
        %v898 = vsel %vm352, %v897, %v896
        %v899 = vrot.slane %v749, 6
        %v900 = vsel %vm355, %v899, %v898
        %v901 = vrot.slane %v722, 5
        %v902 = vrot.slane %v726, 4
        %v903 = vsel %vm337, %v902, %v901
        %v904 = vrot.slane %v730, 3
        %v905 = vsel %vm340, %v904, %v903
        %v906 = vrot.slane %v734, 2
        %v907 = vsel %vm343, %v906, %v905
        %v908 = vrot.slane %v738, 1
        %v909 = vsel %vm346, %v908, %v907
        %v910 = vsel %vm349, %v742, %v909
        %v911 = vrot.slane %v746, 7
        %v912 = vsel %vm352, %v911, %v910
        %v913 = vrot.slane %v750, 6
        %v914 = vsel %vm355, %v913, %v912
        %v919 = vmul.f32 %v857, %v872
        %v920 = vmul.f32 %v857, %v886
        %v921 = vmul.f32 %v857, %v900
        %v922 = vmul.f32 %v857, %v914
        %v923 = vadd.f32 %v851, %v919
        %v924 = vadd.f32 %v852, %v920
        %v925 = vadd.f32 %v853, %v921
        %v926 = vadd.f32 %v854, %v922
        %v927 = vld [vmem:[%s212] sm:$0x88]
        %v928 = vld [vmem:[%s212 + $0x8] sm:$0x88]
        %v929 = vld [vmem:[%s212 + $0x10] sm:$0x88]
        %v930 = vld [vmem:[%s212 + $0x18] sm:$0x88]
        %v931 = vld [vmem:[%s212 + $0x20] sm:$0x88]
        %v932 = vld [vmem:[%s212 + $0x28] sm:$0x88]
        %v933 = vld [vmem:[%s212 + $0x30] sm:$0x88]
        %v934 = vld [vmem:[%s212 + $0x38] sm:$0x88]
        %v935 = vld [vmem:[%s212 + $0x40] sm:$0x88]
        %v936 = vld [vmem:[%s212 + $0x48] sm:$0x88]
        %v937 = vld [vmem:[%s212 + $0x50] sm:$0x88]
        %v938 = vld [vmem:[%s212 + $0x58] sm:$0x88]
        %v939 = vld [vmem:[%s212 + $0x60] sm:$0x88]
        %v940 = vld [vmem:[%s212 + $0x68] sm:$0x88]
        %v941 = vld [vmem:[%s212 + $0x70] sm:$0x88]
        %v942 = vld [vmem:[%s212 + $0x78] sm:$0x88]
        %v943 = vunpack.c.l.bf16 %v927
        %v944 = vunpack.c.h.bf16 %v927
        %v945 = vunpack.c.l.bf16 %v928
        %v946 = vunpack.c.h.bf16 %v928
        %v947 = vunpack.c.l.bf16 %v929
        %v948 = vunpack.c.h.bf16 %v929
        %v949 = vunpack.c.l.bf16 %v930
        %v950 = vunpack.c.h.bf16 %v930
        %v951 = vunpack.c.l.bf16 %v931
        %v952 = vunpack.c.h.bf16 %v931
        %v953 = vunpack.c.l.bf16 %v932
        %v954 = vunpack.c.h.bf16 %v932
        %v955 = vunpack.c.l.bf16 %v933
        %v956 = vunpack.c.h.bf16 %v933
        %v957 = vunpack.c.l.bf16 %v934
        %v958 = vunpack.c.h.bf16 %v934
        %v959 = vunpack.c.l.bf16 %v935
        %v960 = vunpack.c.h.bf16 %v935
        %v961 = vunpack.c.l.bf16 %v936
        %v962 = vunpack.c.h.bf16 %v936
        %v963 = vunpack.c.l.bf16 %v937
        %v964 = vunpack.c.h.bf16 %v937
        %v965 = vunpack.c.l.bf16 %v938
        %v966 = vunpack.c.h.bf16 %v938
        %v967 = vunpack.c.l.bf16 %v939
        %v968 = vunpack.c.h.bf16 %v939
        %v969 = vunpack.c.l.bf16 %v940
        %v970 = vunpack.c.h.bf16 %v940
        %v971 = vunpack.c.l.bf16 %v941
        %v972 = vunpack.c.h.bf16 %v941
        %v973 = vunpack.c.l.bf16 %v942
        %v974 = vunpack.c.h.bf16 %v942
        %975 = vset.pattern.permute.xlu0 6
        %976 = vperm.xlu0 %975, %v250
        %v977 = vpop.permute.xlu0 %976
        %v1011 = vrot.slane %v943, 6
        %v1012 = vrot.slane %v947, 5
        %v1013 = vsel %vm337, %v1012, %v1011
        %v1014 = vrot.slane %v951, 4
        %v1015 = vsel %vm340, %v1014, %v1013
        %v1016 = vrot.slane %v955, 3
        %v1017 = vsel %vm343, %v1016, %v1015
        %v1018 = vrot.slane %v959, 2
        %v1019 = vsel %vm346, %v1018, %v1017
        %v1020 = vrot.slane %v963, 1
        %v1021 = vsel %vm349, %v1020, %v1019
        %v1022 = vsel %vm352, %v967, %v1021
        %v1023 = vrot.slane %v971, 7
        %v1024 = vsel %vm355, %v1023, %v1022
        %v1025 = vrot.slane %v944, 6
        %v1026 = vrot.slane %v948, 5
        %v1027 = vsel %vm337, %v1026, %v1025
        %v1028 = vrot.slane %v952, 4
        %v1029 = vsel %vm340, %v1028, %v1027
        %v1030 = vrot.slane %v956, 3
        %v1031 = vsel %vm343, %v1030, %v1029
        %v1032 = vrot.slane %v960, 2
        %v1033 = vsel %vm346, %v1032, %v1031
        %v1034 = vrot.slane %v964, 1
        %v1035 = vsel %vm349, %v1034, %v1033
        %v1036 = vsel %vm352, %v968, %v1035
        %v1037 = vrot.slane %v972, 7
        %v1038 = vsel %vm355, %v1037, %v1036
        %v1039 = vrot.slane %v945, 6
        %v1040 = vrot.slane %v949, 5
        %v1041 = vsel %vm337, %v1040, %v1039
        %v1042 = vrot.slane %v953, 4
        %v1043 = vsel %vm340, %v1042, %v1041
        %v1044 = vrot.slane %v957, 3
        %v1045 = vsel %vm343, %v1044, %v1043
        %v1046 = vrot.slane %v961, 2
        %v1047 = vsel %vm346, %v1046, %v1045
        %v1048 = vrot.slane %v965, 1
        %v1049 = vsel %vm349, %v1048, %v1047
        %v1050 = vsel %vm352, %v969, %v1049
        %v1051 = vrot.slane %v973, 7
        %v1052 = vsel %vm355, %v1051, %v1050
        %v1053 = vrot.slane %v946, 6
        %v1054 = vrot.slane %v950, 5
        %v1055 = vsel %vm337, %v1054, %v1053
        %v1056 = vrot.slane %v954, 4
        %v1057 = vsel %vm340, %v1056, %v1055
        %v1058 = vrot.slane %v958, 3
        %v1059 = vsel %vm343, %v1058, %v1057
        %v1060 = vrot.slane %v962, 2
        %v1061 = vsel %vm346, %v1060, %v1059
        %v1062 = vrot.slane %v966, 1
        %v1063 = vsel %vm349, %v1062, %v1061
        %v1064 = vsel %vm352, %v970, %v1063
        %v1065 = vrot.slane %v974, 7
        %v1066 = vsel %vm355, %v1065, %v1064
        %v1071 = vmul.f32 %v977, %v1024
        %v1072 = vmul.f32 %v977, %v1038
        %v1073 = vmul.f32 %v977, %v1052
        %v1074 = vmul.f32 %v977, %v1066
        %v1075 = vadd.f32 %v923, %v1071
        %v1076 = vadd.f32 %v924, %v1072
        %v1077 = vadd.f32 %v925, %v1073
        %v1078 = vadd.f32 %v926, %v1074
        %1079 = vset.pattern.permute.xlu0 7
        %1080 = vperm.xlu0 %1079, %v250
        %v1081 = vpop.permute.xlu0 %1080
        %v1083 = vrot.slane %v943, 7
        %v1084 = vrot.slane %v947, 6
        %v1085 = vsel %vm337, %v1084, %v1083
        %v1086 = vrot.slane %v951, 5
        %v1087 = vsel %vm340, %v1086, %v1085
        %v1088 = vrot.slane %v955, 4
        %v1089 = vsel %vm343, %v1088, %v1087
        %v1090 = vrot.slane %v959, 3
        %v1091 = vsel %vm346, %v1090, %v1089
        %v1092 = vrot.slane %v963, 2
        %v1093 = vsel %vm349, %v1092, %v1091
        %v1094 = vrot.slane %v967, 1
        %v1095 = vsel %vm352, %v1094, %v1093
        %v1096 = vsel %vm355, %v971, %v1095
        %v1097 = vrot.slane %v944, 7
        %v1098 = vrot.slane %v948, 6
        %v1099 = vsel %vm337, %v1098, %v1097
        %v1100 = vrot.slane %v952, 5
        %v1101 = vsel %vm340, %v1100, %v1099
        %v1102 = vrot.slane %v956, 4
        %v1103 = vsel %vm343, %v1102, %v1101
        %v1104 = vrot.slane %v960, 3
        %v1105 = vsel %vm346, %v1104, %v1103
        %v1106 = vrot.slane %v964, 2
        %v1107 = vsel %vm349, %v1106, %v1105
        %v1108 = vrot.slane %v968, 1
        %v1109 = vsel %vm352, %v1108, %v1107
        %v1110 = vsel %vm355, %v972, %v1109
        %v1111 = vrot.slane %v945, 7
        %v1112 = vrot.slane %v949, 6
        %v1113 = vsel %vm337, %v1112, %v1111
        %v1114 = vrot.slane %v953, 5
        %v1115 = vsel %vm340, %v1114, %v1113
        %v1116 = vrot.slane %v957, 4
        %v1117 = vsel %vm343, %v1116, %v1115
        %v1118 = vrot.slane %v961, 3
        %v1119 = vsel %vm346, %v1118, %v1117
        %v1120 = vrot.slane %v965, 2
        %v1121 = vsel %vm349, %v1120, %v1119
        %v1122 = vrot.slane %v969, 1
        %v1123 = vsel %vm352, %v1122, %v1121
        %v1124 = vsel %vm355, %v973, %v1123
        %v1125 = vrot.slane %v946, 7
        %v1126 = vrot.slane %v950, 6
        %v1127 = vsel %vm337, %v1126, %v1125
        %v1128 = vrot.slane %v954, 5
        %v1129 = vsel %vm340, %v1128, %v1127
        %v1130 = vrot.slane %v958, 4
        %v1131 = vsel %vm343, %v1130, %v1129
        %v1132 = vrot.slane %v962, 3
        %v1133 = vsel %vm346, %v1132, %v1131
        %v1134 = vrot.slane %v966, 2
        %v1135 = vsel %vm349, %v1134, %v1133
        %v1136 = vrot.slane %v970, 1
        %v1137 = vsel %vm352, %v1136, %v1135
        %v1138 = vsel %vm355, %v974, %v1137
        %v1143 = vmul.f32 %v1081, %v1096
        %v1144 = vmul.f32 %v1081, %v1110
        %v1145 = vmul.f32 %v1081, %v1124
        %v1146 = vmul.f32 %v1081, %v1138
        %v1147 = vadd.f32 %v1075, %v1143
        %v1148 = vadd.f32 %v1076, %v1144
        %v1149 = vadd.f32 %v1077, %v1145
        %v1150 = vadd.f32 %v1078, %v1146
        %v1151 = vpack.c.bf16 %v1147, %v1147
        %v1152 = vpack.c.bf16 %v1148, %v1148
        %v1153 = vpack.c.bf16 %v1149, %v1149
        %v1154 = vpack.c.bf16 %v1150, %v1150
        %v1155 = vld [vmem:[#allocation5] sm:$0xff]
        %v1156 = vld [vmem:[#allocation5 + $0x8] sm:$0xff]
        %v1157 = vld [vmem:[#allocation5 + $0x10] sm:$0xff]
        %v1158 = vld [vmem:[#allocation5 + $0x18] sm:$0xff]
        %v1159 = vld [vmem:[#allocation5 + $0x20] sm:$0xff]
        %v1160 = vld [vmem:[#allocation5 + $0x28] sm:$0xff]
        %v1161 = vld [vmem:[#allocation5 + $0x30] sm:$0xff]
        %v1162 = vld [vmem:[#allocation5 + $0x38] sm:$0xff]
        %v1163 = vld [vmem:[#allocation5 + $0x40] sm:$0xff]
        %v1164 = vld [vmem:[#allocation5 + $0x48] sm:$0xff]
        %v1165 = vld [vmem:[#allocation5 + $0x50] sm:$0xff]
        %v1166 = vld [vmem:[#allocation5 + $0x58] sm:$0xff]
        %v1167 = vld [vmem:[#allocation5 + $0x60] sm:$0xff]
        %v1168 = vld [vmem:[#allocation5 + $0x68] sm:$0xff]
        %v1169 = vld [vmem:[#allocation5 + $0x70] sm:$0xff]
        %v1170 = vld [vmem:[#allocation5 + $0x78] sm:$0xff]
        %v1171 = vld [vmem:[#allocation5 + $0x80] sm:$0xff]
        %v1172 = vld [vmem:[#allocation5 + $0x88] sm:$0xff]
        %v1173 = vld [vmem:[#allocation5 + $0x90] sm:$0xff]
        %v1174 = vld [vmem:[#allocation5 + $0x98] sm:$0xff]
        %v1175 = vld [vmem:[#allocation5 + $0xa0] sm:$0xff]
        %v1176 = vld [vmem:[#allocation5 + $0xa8] sm:$0xff]
        %v1177 = vld [vmem:[#allocation5 + $0xb0] sm:$0xff]
        %v1178 = vld [vmem:[#allocation5 + $0xb8] sm:$0xff]
        %v1179 = vld [vmem:[#allocation5 + $0xc0] sm:$0xff]
        %v1180 = vld [vmem:[#allocation5 + $0xc8] sm:$0xff]
        %v1181 = vld [vmem:[#allocation5 + $0xd0] sm:$0xff]
        %v1182 = vld [vmem:[#allocation5 + $0xd8] sm:$0xff]
        %v1183 = vld [vmem:[#allocation5 + $0xe0] sm:$0xff]
        %v1184 = vld [vmem:[#allocation5 + $0xe8] sm:$0xff]
        %v1185 = vld [vmem:[#allocation5 + $0xf0] sm:$0xff]
        %v1186 = vld [vmem:[#allocation5 + $0xf8] sm:$0xff]
        %v1187 = vld [vmem:[#allocation5 + $0x100] sm:$0xff]
        %v1188 = vld [vmem:[#allocation5 + $0x108] sm:$0xff]
        %v1189 = vld [vmem:[#allocation5 + $0x110] sm:$0xff]
        %v1190 = vld [vmem:[#allocation5 + $0x118] sm:$0xff]
        %v1191 = vld [vmem:[#allocation5 + $0x120] sm:$0xff]
        %v1192 = vld [vmem:[#allocation5 + $0x128] sm:$0xff]
        %v1193 = vld [vmem:[#allocation5 + $0x130] sm:$0xff]
        %v1194 = vld [vmem:[#allocation5 + $0x138] sm:$0xff]
        %v1195 = vld [vmem:[#allocation5 + $0x140] sm:$0xff]
        %v1196 = vld [vmem:[#allocation5 + $0x148] sm:$0xff]
        %v1197 = vld [vmem:[#allocation5 + $0x150] sm:$0xff]
        %v1198 = vld [vmem:[#allocation5 + $0x158] sm:$0xff]
        %v1199 = vld [vmem:[#allocation5 + $0x160] sm:$0xff]
        %v1200 = vld [vmem:[#allocation5 + $0x168] sm:$0xff]
        %v1201 = vld [vmem:[#allocation5 + $0x170] sm:$0xff]
        %v1202 = vld [vmem:[#allocation5 + $0x178] sm:$0xff]
        %v1203 = vld [vmem:[#allocation5 + $0x180] sm:$0xff]
        %v1204 = vld [vmem:[#allocation5 + $0x188] sm:$0xff]
        %v1205 = vld [vmem:[#allocation5 + $0x190] sm:$0xff]
        %v1206 = vld [vmem:[#allocation5 + $0x198] sm:$0xff]
        %v1207 = vld [vmem:[#allocation5 + $0x1a0] sm:$0xff]
        %v1208 = vld [vmem:[#allocation5 + $0x1a8] sm:$0xff]
        %v1209 = vld [vmem:[#allocation5 + $0x1b0] sm:$0xff]
        %v1210 = vld [vmem:[#allocation5 + $0x1b8] sm:$0xff]
        %v1211 = vld [vmem:[#allocation5 + $0x1c0] sm:$0xff]
        %v1212 = vld [vmem:[#allocation5 + $0x1c8] sm:$0xff]
        %v1213 = vld [vmem:[#allocation5 + $0x1d0] sm:$0xff]
        %v1214 = vld [vmem:[#allocation5 + $0x1d8] sm:$0xff]
        %v1215 = vld [vmem:[#allocation5 + $0x1e0] sm:$0xff]
        %v1216 = vld [vmem:[#allocation5 + $0x1e8] sm:$0xff]
        %v1217 = vld [vmem:[#allocation5 + $0x1f0] sm:$0xff]
        %v1218 = vld [vmem:[#allocation5 + $0x1f8] sm:$0xff]
        %v1219 = vld [vmem:[%s3] sm:$0x3]
        %v1221 = vlaneseq
        %v1222 = vshrl.u32 %v1221, 7
        %v1223 = vsub.s32 0, %v1222
        %v1224 = vrot.slane %v1219, %v1223
        %v1225 = vlaneseq
        %v1226 = vshrl.u32 %v1225, 7
        %v1227 = vsub.s32 1, %v1226
        %v1228 = vrot.slane %v1219, %v1227
        %v1295 = vunpack.c.l.b16 %v1155
        %v1296 = vunpack.c.h.b16 %v1155
        %v1297 = vunpack.c.l.b16 %v1156
        %v1298 = vunpack.c.h.b16 %v1156
        %v1299 = vunpack.c.l.b16 %v1157
        %v1300 = vunpack.c.h.b16 %v1157
        %v1301 = vunpack.c.l.b16 %v1158
        %v1302 = vunpack.c.h.b16 %v1158
        %v1303 = vunpack.c.l.b16 %v1159
        %v1304 = vunpack.c.h.b16 %v1159
        %v1305 = vunpack.c.l.b16 %v1160
        %v1306 = vunpack.c.h.b16 %v1160
        %v1307 = vunpack.c.l.b16 %v1161
        %v1308 = vunpack.c.h.b16 %v1161
        %v1309 = vunpack.c.l.b16 %v1162
        %v1310 = vunpack.c.h.b16 %v1162
        %v1311 = vunpack.c.l.b16 %v1163
        %v1312 = vunpack.c.h.b16 %v1163
        %v1313 = vunpack.c.l.b16 %v1164
        %v1314 = vunpack.c.h.b16 %v1164
        %v1315 = vunpack.c.l.b16 %v1165
        %v1316 = vunpack.c.h.b16 %v1165
        %v1317 = vunpack.c.l.b16 %v1166
        %v1318 = vunpack.c.h.b16 %v1166
        %v1319 = vunpack.c.l.b16 %v1167
        %v1320 = vunpack.c.h.b16 %v1167
        %v1321 = vunpack.c.l.b16 %v1168
        %v1322 = vunpack.c.h.b16 %v1168
        %v1323 = vunpack.c.l.b16 %v1169
        %v1324 = vunpack.c.h.b16 %v1169
        %v1325 = vunpack.c.l.b16 %v1170
        %v1326 = vunpack.c.h.b16 %v1170
        %v1327 = vunpack.c.l.b16 %v1171
        %v1328 = vunpack.c.h.b16 %v1171
        %v1329 = vunpack.c.l.b16 %v1172
        %v1330 = vunpack.c.h.b16 %v1172
        %v1331 = vunpack.c.l.b16 %v1173
        %v1332 = vunpack.c.h.b16 %v1173
        %v1333 = vunpack.c.l.b16 %v1174
        %v1334 = vunpack.c.h.b16 %v1174
        %v1335 = vunpack.c.l.b16 %v1175
        %v1336 = vunpack.c.h.b16 %v1175
        %v1337 = vunpack.c.l.b16 %v1176
        %v1338 = vunpack.c.h.b16 %v1176
        %v1339 = vunpack.c.l.b16 %v1177
        %v1340 = vunpack.c.h.b16 %v1177
        %v1341 = vunpack.c.l.b16 %v1178
        %v1342 = vunpack.c.h.b16 %v1178
        %v1343 = vunpack.c.l.b16 %v1179
        %v1344 = vunpack.c.h.b16 %v1179
        %v1345 = vunpack.c.l.b16 %v1180
        %v1346 = vunpack.c.h.b16 %v1180
        %v1347 = vunpack.c.l.b16 %v1181
        %v1348 = vunpack.c.h.b16 %v1181
        %v1349 = vunpack.c.l.b16 %v1182
        %v1350 = vunpack.c.h.b16 %v1182
        %v1351 = vunpack.c.l.b16 %v1183
        %v1352 = vunpack.c.h.b16 %v1183
        %v1353 = vunpack.c.l.b16 %v1184
        %v1354 = vunpack.c.h.b16 %v1184
        %v1355 = vunpack.c.l.b16 %v1185
        %v1356 = vunpack.c.h.b16 %v1185
        %v1357 = vunpack.c.l.b16 %v1186
        %v1358 = vunpack.c.h.b16 %v1186
        %v1359 = vunpack.c.l.b16 %v1187
        %v1360 = vunpack.c.h.b16 %v1187
        %v1361 = vunpack.c.l.b16 %v1188
        %v1362 = vunpack.c.h.b16 %v1188
        %v1363 = vunpack.c.l.b16 %v1189
        %v1364 = vunpack.c.h.b16 %v1189
        %v1365 = vunpack.c.l.b16 %v1190
        %v1366 = vunpack.c.h.b16 %v1190
        %v1367 = vunpack.c.l.b16 %v1191
        %v1368 = vunpack.c.h.b16 %v1191
        %v1369 = vunpack.c.l.b16 %v1192
        %v1370 = vunpack.c.h.b16 %v1192
        %v1371 = vunpack.c.l.b16 %v1193
        %v1372 = vunpack.c.h.b16 %v1193
        %v1373 = vunpack.c.l.b16 %v1194
        %v1374 = vunpack.c.h.b16 %v1194
        %v1375 = vunpack.c.l.b16 %v1195
        %v1376 = vunpack.c.h.b16 %v1195
        %v1377 = vunpack.c.l.b16 %v1196
        %v1378 = vunpack.c.h.b16 %v1196
        %v1379 = vunpack.c.l.b16 %v1197
        %v1380 = vunpack.c.h.b16 %v1197
        %v1381 = vunpack.c.l.b16 %v1198
        %v1382 = vunpack.c.h.b16 %v1198
        %v1383 = vunpack.c.l.b16 %v1199
        %v1384 = vunpack.c.h.b16 %v1199
        %v1385 = vunpack.c.l.b16 %v1200
        %v1386 = vunpack.c.h.b16 %v1200
        %v1387 = vunpack.c.l.b16 %v1201
        %v1388 = vunpack.c.h.b16 %v1201
        %v1389 = vunpack.c.l.b16 %v1202
        %v1390 = vunpack.c.h.b16 %v1202
        %v1391 = vunpack.c.l.b16 %v1203
        %v1392 = vunpack.c.h.b16 %v1203
        %v1393 = vunpack.c.l.b16 %v1204
        %v1394 = vunpack.c.h.b16 %v1204
        %v1395 = vunpack.c.l.b16 %v1205
        %v1396 = vunpack.c.h.b16 %v1205
        %v1397 = vunpack.c.l.b16 %v1206
        %v1398 = vunpack.c.h.b16 %v1206
        %v1399 = vunpack.c.l.b16 %v1207
        %v1400 = vunpack.c.h.b16 %v1207
        %v1401 = vunpack.c.l.b16 %v1208
        %v1402 = vunpack.c.h.b16 %v1208
        %v1403 = vunpack.c.l.b16 %v1209
        %v1404 = vunpack.c.h.b16 %v1209
        %v1405 = vunpack.c.l.b16 %v1210
        %v1406 = vunpack.c.h.b16 %v1210
        %v1407 = vunpack.c.l.b16 %v1211
        %v1408 = vunpack.c.h.b16 %v1211
        %v1409 = vunpack.c.l.b16 %v1212
        %v1410 = vunpack.c.h.b16 %v1212
        %v1411 = vunpack.c.l.b16 %v1213
        %v1412 = vunpack.c.h.b16 %v1213
        %v1413 = vunpack.c.l.b16 %v1214
        %v1414 = vunpack.c.h.b16 %v1214
        %v1415 = vunpack.c.l.b16 %v1215
        %v1416 = vunpack.c.h.b16 %v1215
        %v1417 = vunpack.c.l.b16 %v1216
        %v1418 = vunpack.c.h.b16 %v1216
        %v1419 = vunpack.c.l.b16 %v1217
        %v1420 = vunpack.c.h.b16 %v1217
        %v1421 = vunpack.c.l.b16 %v1218
        %v1422 = vunpack.c.h.b16 %v1218
        %v1423 = vpack.c.b16 %v1297, %v1295
        %v1424 = vpack.c.b16 %v1298, %v1296
        %v1425 = vpack.c.b16 %v1301, %v1299
        %v1426 = vpack.c.b16 %v1302, %v1300
        %v1427 = vpack.c.b16 %v1305, %v1303
        %v1428 = vpack.c.b16 %v1306, %v1304
        %v1429 = vpack.c.b16 %v1309, %v1307
        %v1430 = vpack.c.b16 %v1310, %v1308
        %v1431 = vpack.c.b16 %v1313, %v1311
        %v1432 = vpack.c.b16 %v1314, %v1312
        %v1433 = vpack.c.b16 %v1317, %v1315
        %v1434 = vpack.c.b16 %v1318, %v1316
        %v1435 = vpack.c.b16 %v1321, %v1319
        %v1436 = vpack.c.b16 %v1322, %v1320
        %v1437 = vpack.c.b16 %v1325, %v1323
        %v1438 = vpack.c.b16 %v1326, %v1324
        %v1439 = vpack.c.b16 %v1329, %v1327
        %v1440 = vpack.c.b16 %v1330, %v1328
        %v1441 = vpack.c.b16 %v1333, %v1331
        %v1442 = vpack.c.b16 %v1334, %v1332
        %v1443 = vpack.c.b16 %v1337, %v1335
        %v1444 = vpack.c.b16 %v1338, %v1336
        %v1445 = vpack.c.b16 %v1341, %v1339
        %v1446 = vpack.c.b16 %v1342, %v1340
        %v1447 = vpack.c.b16 %v1345, %v1343
        %v1448 = vpack.c.b16 %v1346, %v1344
        %v1449 = vpack.c.b16 %v1349, %v1347
        %v1450 = vpack.c.b16 %v1350, %v1348
        %v1451 = vpack.c.b16 %v1353, %v1351
        %v1452 = vpack.c.b16 %v1354, %v1352
        %v1453 = vpack.c.b16 %v1357, %v1355
        %v1454 = vpack.c.b16 %v1358, %v1356
        %v1455 = vpack.c.b16 %v1361, %v1359
        %v1456 = vpack.c.b16 %v1362, %v1360
        %v1457 = vpack.c.b16 %v1365, %v1363
        %v1458 = vpack.c.b16 %v1366, %v1364
        %v1459 = vpack.c.b16 %v1369, %v1367
        %v1460 = vpack.c.b16 %v1370, %v1368
        %v1461 = vpack.c.b16 %v1373, %v1371
        %v1462 = vpack.c.b16 %v1374, %v1372
        %v1463 = vpack.c.b16 %v1377, %v1375
        %v1464 = vpack.c.b16 %v1378, %v1376
        %v1465 = vpack.c.b16 %v1381, %v1379
        %v1466 = vpack.c.b16 %v1382, %v1380
        %v1467 = vpack.c.b16 %v1385, %v1383
        %v1468 = vpack.c.b16 %v1386, %v1384
        %v1469 = vpack.c.b16 %v1389, %v1387
        %v1470 = vpack.c.b16 %v1390, %v1388
        %v1471 = vpack.c.b16 %v1393, %v1391
        %v1472 = vpack.c.b16 %v1394, %v1392
        %v1473 = vpack.c.b16 %v1397, %v1395
        %v1474 = vpack.c.b16 %v1398, %v1396
        %v1475 = vpack.c.b16 %v1401, %v1399
        %v1476 = vpack.c.b16 %v1402, %v1400
        %v1477 = vpack.c.b16 %v1405, %v1403
        %v1478 = vpack.c.b16 %v1406, %v1404
        %v1479 = vpack.c.b16 %v1409, %v1407
        %v1480 = vpack.c.b16 %v1410, %v1408
        %v1481 = vpack.c.b16 %v1413, %v1411
        %v1482 = vpack.c.b16 %v1414, %v1412
        %v1483 = vpack.c.b16 %v1417, %v1415
        %v1484 = vpack.c.b16 %v1418, %v1416
        %v1485 = vpack.c.b16 %v1421, %v1419
        %v1486 = vpack.c.b16 %v1422, %v1420
        %1551 = vmatprep.subr.bf16.mxu0 %v1438
        %1552 = vmatpush1.bf16.msra.mxu0 %v1437
        %1553 = vmatprep.subr.bf16.mxu0 %v1436
        %1554 = vmatpush1.bf16.msra.mxu0 %v1435
        %1555 = vmatprep.subr.bf16.mxu0 %v1434
        %1556 = vmatpush1.bf16.msra.mxu0 %v1433
        %1557 = vmatprep.subr.bf16.mxu0 %v1432
        %1558 = vmatpush1.bf16.msra.mxu0 %v1431
        %1559 = vmatprep.subr.bf16.mxu0 %v1430
        %1560 = vmatpush1.bf16.msra.mxu0 %v1429
        %1561 = vmatprep.subr.bf16.mxu0 %v1428
        %1562 = vmatpush1.bf16.msra.mxu0 %v1427
        %1563 = vmatprep.subr.bf16.mxu0 %v1426
        %1564 = vmatpush1.bf16.msra.mxu0 %v1425
        %1565 = vmatprep.subr.bf16.mxu0 %v1424
        %1566 = vmatpush1.bf16.msra.mxu0 %v1423
        %1567 = vmatprep.subr.bf16.mxu0 %v1454
        %1568 = vmatpush2.bf16.msra.mxu0 %v1453
        %1569 = vmatprep.subr.bf16.mxu0 %v1452
        %1570 = vmatpush2.bf16.msra.mxu0 %v1451
        %1571 = vmatprep.subr.bf16.mxu0 %v1450
        %1572 = vmatpush2.bf16.msra.mxu0 %v1449
        %1573 = vmatprep.subr.bf16.mxu0 %v1448
        %1574 = vmatpush2.bf16.msra.mxu0 %v1447
        %1575 = vmatprep.subr.bf16.mxu0 %v1446
        %1576 = vmatpush2.bf16.msra.mxu0 %v1445
        %1577 = vmatprep.subr.bf16.mxu0 %v1444
        %1578 = vmatpush2.bf16.msra.mxu0 %v1443
        %1579 = vmatprep.subr.bf16.mxu0 %v1442
        %1580 = vmatpush2.bf16.msra.mxu0 %v1441
        %1581 = vmatprep.subr.bf16.mxu0 %v1440
        %1582 = vmatpush2.bf16.msra.mxu0 %v1439
        %1583 = vmatprep.mubr.bf16.mxu0 %v1152
        %1584 = vmatmul.mubr.bf16.gmra.mxu0 %v1151
        %v1585 = vpop.f32.mrf.mxu0
        %v1586 = vadd.f32 %v1224, %v1585
        %v1587 = vpop.f32.mrf.mxu0
        %v1588 = vadd.f32 %v1228, %v1587
        %v1589 = vpop.f32.mrf.mxu0
        %v1590 = vpop.f32.mrf.mxu0
        %1591 = vdwg.mxu0
        %1592 = vmatprep.subr.bf16.mxu0 %v1470
        %1593 = vmatpush1.bf16.msra.mxu0 %v1469
        %1594 = vmatprep.subr.bf16.mxu0 %v1468
        %1595 = vmatpush1.bf16.msra.mxu0 %v1467
        %1596 = vmatprep.subr.bf16.mxu0 %v1466
        %1597 = vmatpush1.bf16.msra.mxu0 %v1465
        %1598 = vmatprep.subr.bf16.mxu0 %v1464
        %1599 = vmatpush1.bf16.msra.mxu0 %v1463
        %1600 = vmatprep.subr.bf16.mxu0 %v1462
        %1601 = vmatpush1.bf16.msra.mxu0 %v1461
        %1602 = vmatprep.subr.bf16.mxu0 %v1460
        %1603 = vmatpush1.bf16.msra.mxu0 %v1459
        %1604 = vmatprep.subr.bf16.mxu0 %v1458
        %1605 = vmatpush1.bf16.msra.mxu0 %v1457
        %1606 = vmatprep.subr.bf16.mxu0 %v1456
        %1607 = vmatpush1.bf16.msra.mxu0 %v1455
        %1608 = vmatprep.subr.bf16.mxu0 %v1486
        %1609 = vmatpush2.bf16.msra.mxu0 %v1485
        %1610 = vmatprep.subr.bf16.mxu0 %v1484
        %1611 = vmatpush2.bf16.msra.mxu0 %v1483
        %1612 = vmatprep.subr.bf16.mxu0 %v1482
        %1613 = vmatpush2.bf16.msra.mxu0 %v1481
        %1614 = vmatprep.subr.bf16.mxu0 %v1480
        %1615 = vmatpush2.bf16.msra.mxu0 %v1479
        %1616 = vmatprep.subr.bf16.mxu0 %v1478
        %1617 = vmatpush2.bf16.msra.mxu0 %v1477
        %1618 = vmatprep.subr.bf16.mxu0 %v1476
        %1619 = vmatpush2.bf16.msra.mxu0 %v1475
        %1620 = vmatprep.subr.bf16.mxu0 %v1474
        %1621 = vmatpush2.bf16.msra.mxu0 %v1473
        %1622 = vmatprep.subr.bf16.mxu0 %v1472
        %1623 = vmatpush2.bf16.msra.mxu0 %v1471
        %1624 = vmatprep.mubr.bf16.mxu0 %v1154
        %1625 = vmatmul.mubr.bf16.gmra.mxu0 %v1153
        %v1626 = vpop.f32.mrf.mxu0
        %v1627 = vadd.f32 %v1586, %v1626
        %v1628 = vpop.f32.mrf.mxu0
        %v1629 = vadd.f32 %v1588, %v1628
        %v1630 = vpop.f32.mrf.mxu0
        %v1631 = vpop.f32.mrf.mxu0
        %1632 = vdwg.mxu0
        %1633 = vst [vmem:[%s244] sm:$0xff] %v1627
        %1634 = vst [vmem:[%s244 + $0x8] sm:$0xff] %v1629
        %s1635 = sand.u32 %s124, 1
        %s1636 = scalar_lea.sflag [#allocation4], %s1635
        %s1637 = sand.u32 %s124, 1
        %s1638 = smul.addr %s1637, 16
        %s1639 = scalar_lea.vmem [#allocation7], %s1638
        // Predicated region
        $region45: #{tpu_custom_call.1} parent=35 // pred_check
          %p1640 = pneg %p134
        $region46: #{tpu_custom_call.1} parent=35 // pred_check_branch
          %1642 = sbr.rel (%p1640) target = $region48
        $region47: #{tpu_custom_call.1} parent=35 // pred_region
          %s1644 = ssub.s32 256, 256
          %1645 = vsyncadd %s1636, %s1644
          %s1646 = smul.addr %s22, 2
          %s1647 = smul.addr %s1646, 128
          %s1648 = scalar_lea.hbm %s4, %s1647
          %s1650 = sshll.u32 %s1639, 4
          %s1651 = int_to_ptr.vmem [resolvable:$true] %s1650
          %1653 = dma.vmem_to_hbm [thread:$0]  %s1651, 256, %s1648, %s1636
        $region48: #{tpu_custom_call.1} parent=35 // pred_fallthru
          _
      $region36: #{tpu_custom_call.1} parent=5 // pred_fallthru
        _
      %p1654 = scmp.le.s32.totalorder 2, %s17
      // Predicated region
      $region49: #{tpu_custom_call.1} parent=5 // pred_check
        %p1655 = pneg %p1654
      $region50: #{tpu_custom_call.1} parent=5 // pred_check_branch
        %1657 = sbr.rel (%p1655) target = $region52
      $region51: #{tpu_custom_call.1} parent=5 // pred_region
        %s1658 = ssub.s32 %s17, 2
        // Predicated region
        $region53: #{tpu_custom_call.1} parent=51 // pred_check
          %p1659 = pneg %p140
        $region54: #{tpu_custom_call.1} parent=51 // pred_check_branch
          %1661 = sbr.rel (%p1659) target = $region56
        $region55: #{tpu_custom_call.1} parent=51 // pred_region
          %s1662 = sand.u32 %s125, 1
          %s1663 = scalar_lea.sflag [#allocation4], %s1662
          %s1664 = sand.u32 %s125, 1
          %s1665 = smul.addr %s1664, 16
          %s1666 = scalar_lea.vmem [#allocation7], %s1665
          %1667 = dma.done %s1663, 256
        $region56: #{tpu_custom_call.1} parent=51 // pred_fallthru
          _
      $region52: #{tpu_custom_call.1} parent=5 // pred_fallthru
        _
    $region6: #{tpu_custom_call.1} parent=1 // loop_footer
      %s21 = sadd.s32 1, %s17
    $region7: #{tpu_custom_call.1} parent=1 // loop_footer_branch
      %16 = sbr.rel target = $region3
    $region8: #{tpu_custom_call.1} parent=1 // loop_exit
      _
    %1668 = vsyncpa [#allocation3], 1
    %s1669 = scalar_lea.sflag [#allocation3], 1
    %1670 = vsyncpa %s1669, 1
    %1671 = vsyncpa [#allocation6], 1
    %1672 = vsyncpa [#allocation4], 1
    %s1673 = scalar_lea.sflag [#allocation4], 1
    %1674 = vsyncpa %s1673, 1

</llo_original>
